<compile_context>
chip_gen: v7x
topology: tpu7x:2x2x1
jax: 0.10.0
libtpu: 0.0.40
codegen_flags: <defaults>
</compile_context>

<pallas_src>
import functools

import jax
import jax.numpy as jnp
from jax.experimental import pallas as pl
from jax.experimental.pallas import tpu as pltpu


def _round_up(x, m):
    return ((x + m - 1) // m) * m


def _encoder_head_kernel(embeds_ref, mask_ref, w_ref, b_ref, onehot_ref,
                         prob_ref, perex_ref, acc_sum, acc_cnt, *, num_classes):
    s = pl.program_id(1)

    # ---- init accumulators at the first sequence tile -----------------------
    @pl.when(s == 0)
    def _():
        acc_sum[...] = jnp.zeros_like(acc_sum)
        acc_cnt[...] = jnp.zeros_like(acc_cnt)

    # ---- masked sum over this sequence tile ---------------------------------
    mask = mask_ref[...]                              # (tb, ts) f32, 1.0 where id != 1
    emb = embeds_ref[...].astype(jnp.float32)         # (tb, ts, H) bf16 -> f32
    # f32 mask-multiply + sublane reduction (VPU/XLU).  Kept in f32 so the same
    # code is valid on v5e (no bf16 VPU); this stage is HBM-bound at these tile
    # sizes, so an MXU einsum formulation would not change wall clock.
    acc_sum[...] += jnp.sum(emb * mask[:, :, None], axis=1)          # (tb, H)
    acc_cnt[...] += jnp.sum(mask, axis=-1, keepdims=True)            # (tb, 1)

    # ---- finalize at the last sequence tile ---------------------------------
    @pl.when(s == pl.num_programs(1) - 1)
    def _():
        pooled = acc_sum[...] / jnp.maximum(acc_cnt[...], 1.0)        # (tb, H)

        # classification head (MXU matmul, lane-dense padded N)
        logits = jnp.dot(pooled, w_ref[...],
                         preferred_element_type=jnp.float32) + b_ref[...]  # (tb, Cpad)

        c_pad = logits.shape[-1]
        valid = jax.lax.broadcasted_iota(jnp.int32, (1, c_pad), 1) < num_classes
        logits = jnp.where(valid, logits, -jnp.inf)   # padded classes -> prob 0

        # prob = softmax(logits, dim=-1)
        m1 = jnp.max(logits, axis=-1, keepdims=True)
        e1 = jnp.exp(logits - m1)
        prob = e1 / jnp.sum(e1, axis=-1, keepdims=True)
        prob_ref[...] = prob

        # CrossEntropyLoss(prob, labels): treats `prob` as raw logits (as in the
        # PyTorch module).  Log-sum-exp only over the *valid* classes.
        p_ce = jnp.where(valid, prob, -jnp.inf)
        m2 = jnp.max(p_ce, axis=-1, keepdims=True)
        lse = m2 + jnp.log(jnp.sum(jnp.exp(p_ce - m2), axis=-1, keepdims=True))
        logsm = prob - lse
        perex_ref[...] = -jnp.sum(onehot_ref[...] * logsm, axis=-1, keepdims=True)


def model_forward(input_ids, labels, emb_table, head_w, head_b,
                  *, tile_b=8, tile_s=128):
    """Mirrors Model.forward(input_ids, labels) -> (loss, prob)."""
    B, S = input_ids.shape
    V, H = emb_table.shape
    C = head_w.shape[1]

    tile_b = min(tile_b, _round_up(B, 8))
    tile_s = min(tile_s, _round_up(S, 8))
    B_pad = _round_up(B, tile_b)
    S_pad = _round_up(S, tile_s)
    C_pad = _round_up(C, 128)        # lane-dense class dim for prob store / MXU N

    # --- glue (plain JAX): embedding gather kept in bf16 (halves DMA bytes of
    #     the memory-bound pooling stage), attention_mask = input_ids.ne(1),
    #     one-hot labels, zero-padding to tile boundaries. ---------------------
    # TODO(synk): fuse the embedding gather into the kernel (scalar-prefetched
    # ids + DMA gather from an HBM-resident table) for large vocab/hidden sizes;
    # at H=128 a per-row in-kernel DMA gather is descriptor-bound, so the XLA
    # gather stays outside.
    embeds = emb_table.astype(jnp.bfloat16)[input_ids]            # (B, S, H) bf16
    mask = (input_ids != 1).astype(jnp.float32)                   # (B, S)

    embeds = jnp.pad(embeds, ((0, B_pad - B), (0, S_pad - S), (0, 0)))
    mask = jnp.pad(mask, ((0, B_pad - B), (0, S_pad - S)))
    w_p = jnp.pad(head_w.astype(jnp.float32), ((0, 0), (0, C_pad - C)))
    b_p = jnp.pad(head_b.astype(jnp.float32).reshape(1, C), ((0, 0), (0, C_pad - C)))
    labels_p = jnp.pad(labels, (0, B_pad - B))
    onehot = jax.nn.one_hot(labels_p, C_pad, dtype=jnp.float32)   # (B_pad, C_pad)

    grid = (B_pad // tile_b, S_pad // tile_s)

    prob_pad, per_ex = pl.pallas_call(
        functools.partial(_encoder_head_kernel, num_classes=C),
        out_shape=(
            jax.ShapeDtypeStruct((B_pad, C_pad), jnp.float32),    # prob (padded)
            jax.ShapeDtypeStruct((B_pad, 1), jnp.float32),        # per-example NLL
        ),
        grid_spec=pltpu.PrefetchScalarGridSpec(
            num_scalar_prefetch=0,
            grid=grid,
            in_specs=[
                pl.BlockSpec((tile_b, tile_s, H), lambda b, s: (b, s, 0)),  # embeds bf16
                pl.BlockSpec((tile_b, tile_s), lambda b, s: (b, s)),        # mask f32
                pl.BlockSpec((H, C_pad), lambda b, s: (0, 0)),              # head W
                pl.BlockSpec((1, C_pad), lambda b, s: (0, 0)),              # head bias
                pl.BlockSpec((tile_b, C_pad), lambda b, s: (b, 0)),         # one-hot labels
            ],
            out_specs=(
                pl.BlockSpec((tile_b, C_pad), lambda b, s: (b, 0)),         # prob
                pl.BlockSpec((tile_b, 1), lambda b, s: (b, 0)),             # per-ex loss
            ),
            scratch_shapes=[
                pltpu.VMEM((tile_b, H), jnp.float32),   # pooled-sum accumulator
                pltpu.VMEM((tile_b, 1), jnp.float32),   # token-count accumulator
            ],
        ),
        compiler_params=pltpu.CompilerParams(
            dimension_semantics=("parallel", "arbitrary"),   # B parallel (megacore), S reduction
            vmem_limit_bytes=48 * 1024 * 1024,
        ),
    )(embeds, mask, w_p, b_p, onehot)

    prob = prob_pad[:B, :C]
    loss = jnp.mean(per_ex[:B, 0])
    return loss, prob


def _reference(input_ids, labels, emb_table, head_w, head_b):
    embeds = emb_table.astype(jnp.bfloat16)[input_ids].astype(jnp.float32)
    mask = (input_ids != 1).astype(jnp.float32)
    pooled = (embeds * mask[:, :, None]).sum(1) / jnp.maximum(
        mask.sum(-1, keepdims=True), 1.0)
    logits = jnp.dot(pooled, head_w, precision=jax.lax.Precision.HIGHEST) + head_b
    prob = jax.nn.softmax(logits, axis=-1)
    logsm = jax.nn.log_softmax(prob, axis=-1)      # CE applied to prob, PyTorch semantics
    loss = -jnp.mean(jnp.take_along_axis(logsm, labels[:, None], axis=-1))
    return loss, prob


if __name__ == "__main__":
    key = jax.random.PRNGKey(0)
    k_ids, k_lab, k_emb, k_w, k_b = jax.random.split(key, 5)

    # Small but tile-exercising shapes: grid = (2 batch tiles, 2 sequence tiles).
    B, S, V, H, C = 16, 256, 512, 128, 4

    input_ids = jax.random.randint(k_ids, (B, S), 0, V, dtype=jnp.int32)
    # force some pad tokens (id == 1) so the attention-mask path is exercised
    input_ids = input_ids.at[0, -7:].set(1)
    input_ids = input_ids.at[3, 100:].set(1)
    labels = jax.random.randint(k_lab, (B,), 0, C, dtype=jnp.int32)

    emb_table = 0.02 * jax.random.normal(k_emb, (V, H), dtype=jnp.float32)
    head_w = 0.1 * jax.random.normal(k_w, (H, C), dtype=jnp.float32)
    head_b = 0.1 * jax.random.normal(k_b, (C,), dtype=jnp.float32)

    loss, prob = model_forward(input_ids, labels, emb_table, head_w, head_b)
    jax.block_until_ready((loss, prob))

    ref_loss, ref_prob = _reference(input_ids, labels, emb_table, head_w, head_b)
    assert prob.shape == (B, C)
    assert jnp.allclose(prob, ref_prob, atol=2e-5), "prob mismatch"
    assert jnp.allclose(loss, ref_loss, atol=2e-5), "loss mismatch"

    print("KERNEL_OK")
</pallas_src>

<mosaic_0001>
module attributes {stable_mosaic.version = 11 : i64} {
  func.func @_encoder_head_kernel(%arg0: i32, %arg1: i32, %arg2: memref<8x128x128xbf16, #tpu.memory_space<vmem>>, %arg3: memref<8x128xf32, #tpu.memory_space<vmem>>, %arg4: memref<128x128xf32, #tpu.memory_space<vmem>>, %arg5: memref<1x128xf32, #tpu.memory_space<vmem>>, %arg6: memref<8x128xf32, #tpu.memory_space<vmem>>, %arg7: memref<8x128xf32, #tpu.memory_space<vmem>>, %arg8: memref<8x1xf32, #tpu.memory_space<vmem>>, %arg9: memref<8x128xf32, #tpu.memory_space<vmem>>, %arg10: memref<8x1xf32, #tpu.memory_space<vmem>>) attributes {dimension_semantics = [#tpu.dimension_semantics<parallel>, #tpu.dimension_semantics<arbitrary>], iteration_bounds = array<i64: 2, 2>, scalar_prefetch = 0 : i64, scratch_operands = 2 : i64, tpu.core_type = #tpu.core_type<tc>, window_params = [{transform_indices = @transform_0, window_bounds = array<i64: 8, 128, 128>}, {transform_indices = @transform_1, window_bounds = array<i64: 8, 128>}, {pipeline_mode = #tpu.pipeline_mode<synchronous>, transform_indices = @transform_2, window_bounds = array<i64: 128, 128>}, {pipeline_mode = #tpu.pipeline_mode<synchronous>, transform_indices = @transform_3, window_bounds = array<i64: 1, 128>}, {transform_indices = @transform_4, window_bounds = array<i64: 8, 128>}, {transform_indices = @transform_5, window_bounds = array<i64: 8, 128>}, {transform_indices = @transform_6, window_bounds = array<i64: 8, 1>}]} {
    %c0_i32 = arith.constant 0 : i32
    %0 = arith.cmpi eq, %arg1, %c0_i32 : i32
    %1 = arith.extui %0 : i1 to i32
    %c0_i32_0 = arith.constant 0 : i32
    %2 = arith.cmpi ne, %1, %c0_i32_0 : i32
    scf.if %2 {
      %cst_15 = arith.constant 0.000000e+00 : f32
      %21 = vector.broadcast %cst_15 : f32 to vector<8x128xf32>
      %c0_16 = arith.constant 0 : index
      %c0_17 = arith.constant 0 : index
      %22 = vector.load %arg9[%c0_16, %c0_17] : memref<8x128xf32, #tpu.memory_space<vmem>>, vector<8x128xf32>
      tpu.vector_store %arg9[%c0_16, %c0_17], %21 {strides = array<i32>} : memref<8x128xf32, #tpu.memory_space<vmem>>, vector<8x128xf32>,
      %cst_18 = arith.constant 0.000000e+00 : f32
      %23 = vector.broadcast %cst_18 : f32 to vector<8x1xf32>
      %c0_19 = arith.constant 0 : index
      %c0_20 = arith.constant 0 : index
      %24 = vector.load %arg10[%c0_19, %c0_20] : memref<8x1xf32, #tpu.memory_space<vmem>>, vector<8x1xf32>
      tpu.vector_store %arg10[%c0_19, %c0_20], %23 {strides = array<i32>} : memref<8x1xf32, #tpu.memory_space<vmem>>, vector<8x1xf32>,
    } else {
    }
    %c0 = arith.constant 0 : index
    %c0_1 = arith.constant 0 : index
    %3 = vector.load %arg3[%c0, %c0_1] : memref<8x128xf32, #tpu.memory_space<vmem>>, vector<8x128xf32>
    %c0_2 = arith.constant 0 : index
    %c0_3 = arith.constant 0 : index
    %c0_4 = arith.constant 0 : index
    %4 = vector.load %arg2[%c0_2, %c0_3, %c0_4] : memref<8x128x128xbf16, #tpu.memory_space<vmem>>, vector<8x128x128xbf16>
    %5 = arith.extf %4 : vector<8x128x128xbf16> to vector<8x128x128xf32>
    %c0_5 = arith.constant 0 : index
    %c0_6 = arith.constant 0 : index
    %6 = vector.load %arg9[%c0_5, %c0_6] : memref<8x128xf32, #tpu.memory_space<vmem>>, vector<8x128xf32>
    %7 = vector.shape_cast %3 : vector<8x128xf32> to vector<8x128x1xf32>
    %8 = vector.broadcast %7 : vector<8x128x1xf32> to vector<8x128x128xf32>
    %9 = arith.mulf %5, %8 : vector<8x128x128xf32>
    %cst = arith.constant dense<0.000000e+00> : vector<8x128xf32>
    %10 = vector.multi_reduction <add>, %9, %cst [1] : vector<8x128x128xf32> to vector<8x128xf32>
    %11 = arith.addf %6, %10 : vector<8x128xf32>
    %c0_7 = arith.constant 0 : index
    %c0_8 = arith.constant 0 : index
    %12 = vector.load %arg9[%c0_7, %c0_8] : memref<8x128xf32, #tpu.memory_space<vmem>>, vector<8x128xf32>
    tpu.vector_store %arg9[%c0_7, %c0_8], %11 {strides = array<i32>} : memref<8x128xf32, #tpu.memory_space<vmem>>, vector<8x128xf32>,
    %c0_9 = arith.constant 0 : index
    %c0_10 = arith.constant 0 : index
    %13 = vector.load %arg10[%c0_9, %c0_10] : memref<8x1xf32, #tpu.memory_space<vmem>>, vector<8x1xf32>
    %cst_11 = arith.constant dense<0.000000e+00> : vector<8xf32>
    %14 = vector.multi_reduction <add>, %3, %cst_11 [1] : vector<8x128xf32> to vector<8xf32>
    %15 = vector.shape_cast %14 : vector<8xf32> to vector<8x1xf32>
    %16 = arith.addf %13, %15 : vector<8x1xf32>
    %c0_12 = arith.constant 0 : index
    %c0_13 = arith.constant 0 : index
    %17 = vector.load %arg10[%c0_12, %c0_13] : memref<8x1xf32, #tpu.memory_space<vmem>>, vector<8x1xf32>
    tpu.vector_store %arg10[%c0_12, %c0_13], %16 {strides = array<i32>} : memref<8x1xf32, #tpu.memory_space<vmem>>, vector<8x1xf32>,
    %c1_i32 = arith.constant 1 : i32
    %18 = arith.cmpi eq, %arg1, %c1_i32 : i32
    %19 = arith.extui %18 : i1 to i32
    %c0_i32_14 = arith.constant 0 : i32
    %20 = arith.cmpi ne, %19, %c0_i32_14 : i32
    scf.if %20 {
      %c0_15 = arith.constant 0 : index
      %c0_16 = arith.constant 0 : index
      %21 = vector.load %arg9[%c0_15, %c0_16] : memref<8x128xf32, #tpu.memory_space<vmem>>, vector<8x128xf32>
      %c0_17 = arith.constant 0 : index
      %c0_18 = arith.constant 0 : index
      %22 = vector.load %arg10[%c0_17, %c0_18] : memref<8x1xf32, #tpu.memory_space<vmem>>, vector<8x1xf32>
      %cst_19 = arith.constant 1.000000e+00 : f32
      %23 = vector.broadcast %cst_19 : f32 to vector<8x1xf32>
      %24 = arith.maximumf %22, %23 : vector<8x1xf32>
      %25 = vector.broadcast %24 : vector<8x1xf32> to vector<8x128xf32>
      %26 = arith.divf %21, %25 : vector<8x128xf32>
      %c0_20 = arith.constant 0 : index
      %c0_21 = arith.constant 0 : index
      %27 = vector.load %arg4[%c0_20, %c0_21] : memref<128x128xf32, #tpu.memory_space<vmem>>, vector<128x128xf32>
      %cst_22 = arith.constant dense<0.000000e+00> : vector<8x128xf32>
      %28 = tpu.matmul %26, %27, %cst_22 {dimension_numbers = #tpu.dot_dimension_numbers<[1], [0], [0], [1], [0, 0, 1, 1], [], []>} : vector<8x128xf32>, vector<128x128xf32>, vector<8x128xf32> -> vector<8x128xf32>
      %c0_23 = arith.constant 0 : index
      %c0_24 = arith.constant 0 : index
      %29 = vector.load %arg5[%c0_23, %c0_24] : memref<1x128xf32, #tpu.memory_space<vmem>>, vector<1x128xf32>
      %30 = vector.broadcast %29 : vector<1x128xf32> to vector<8x128xf32>
      %31 = arith.addf %28, %30 : vector<8x128xf32>
      %32 = tpu.iota {dimensions = array<i32: 1>} : vector<1x128xi32>
      %c4_i32 = arith.constant 4 : i32
      %33 = vector.broadcast %c4_i32 : i32 to vector<1x128xi32>
      %34 = arith.cmpi slt, %32, %33 : vector<1x128xi32>
      %cst_25 = arith.constant 0xFF800000 : f32
      %35 = vector.shape_cast %34 : vector<1x128xi1> to vector<1x128xi1>
      %36 = vector.broadcast %35 : vector<1x128xi1> to vector<8x128xi1>
      %37 = vector.broadcast %cst_25 : f32 to vector<8x128xf32>
      %38 = arith.select %36, %31, %37 : vector<8x128xi1>, vector<8x128xf32>
      %cst_26 = arith.constant dense<0xFF800000> : vector<8xf32>
      %39 = vector.multi_reduction <maximumf>, %38, %cst_26 [1] : vector<8x128xf32> to vector<8xf32>
      %40 = vector.shape_cast %39 : vector<8xf32> to vector<8x1xf32>
      %41 = vector.broadcast %40 : vector<8x1xf32> to vector<8x128xf32>
      %42 = arith.subf %38, %41 : vector<8x128xf32>
      %43 = math.exp %42 : vector<8x128xf32>
      %cst_27 = arith.constant dense<0.000000e+00> : vector<8xf32>
      %44 = vector.multi_reduction <add>, %43, %cst_27 [1] : vector<8x128xf32> to vector<8xf32>
      %45 = vector.shape_cast %44 : vector<8xf32> to vector<8x1xf32>
      %46 = vector.broadcast %45 : vector<8x1xf32> to vector<8x128xf32>
      %47 = arith.divf %43, %46 : vector<8x128xf32>
      %c0_28 = arith.constant 0 : index
      %c0_29 = arith.constant 0 : index
      %48 = vector.load %arg7[%c0_28, %c0_29] : memref<8x128xf32, #tpu.memory_space<vmem>>, vector<8x128xf32>
      tpu.vector_store %arg7[%c0_28, %c0_29], %47 {strides = array<i32>} : memref<8x128xf32, #tpu.memory_space<vmem>>, vector<8x128xf32>,
      %cst_30 = arith.constant 0xFF800000 : f32
      %49 = vector.shape_cast %34 : vector<1x128xi1> to vector<1x128xi1>
      %50 = vector.broadcast %49 : vector<1x128xi1> to vector<8x128xi1>
      %51 = vector.broadcast %cst_30 : f32 to vector<8x128xf32>
      %52 = arith.select %50, %47, %51 : vector<8x128xi1>, vector<8x128xf32>
      %cst_31 = arith.constant dense<0xFF800000> : vector<8xf32>
      %53 = vector.multi_reduction <maximumf>, %52, %cst_31 [1] : vector<8x128xf32> to vector<8xf32>
      %54 = vector.shape_cast %53 : vector<8xf32> to vector<8x1xf32>
      %55 = vector.broadcast %54 : vector<8x1xf32> to vector<8x128xf32>
      %56 = arith.subf %52, %55 : vector<8x128xf32>
      %57 = math.exp %56 : vector<8x128xf32>
      %cst_32 = arith.constant dense<0.000000e+00> : vector<8xf32>
      %58 = vector.multi_reduction <add>, %57, %cst_32 [1] : vector<8x128xf32> to vector<8xf32>
      %59 = vector.shape_cast %58 : vector<8xf32> to vector<8x1xf32>
      %60 = math.log %59 : vector<8x1xf32>
      %61 = arith.addf %54, %60 : vector<8x1xf32>
      %62 = vector.broadcast %61 : vector<8x1xf32> to vector<8x128xf32>
      %63 = arith.subf %47, %62 : vector<8x128xf32>
      %c0_33 = arith.constant 0 : index
      %c0_34 = arith.constant 0 : index
      %64 = vector.load %arg6[%c0_33, %c0_34] : memref<8x128xf32, #tpu.memory_space<vmem>>, vector<8x128xf32>
      %65 = arith.mulf %64, %63 : vector<8x128xf32>
      %cst_35 = arith.constant dense<0.000000e+00> : vector<8xf32>
      %66 = vector.multi_reduction <add>, %65, %cst_35 [1] : vector<8x128xf32> to vector<8xf32>
      %67 = vector.shape_cast %66 : vector<8xf32> to vector<8x1xf32>
      %cst_36 = arith.constant 0.000000e+00 : f32
      %68 = vector.broadcast %cst_36 : f32 to vector<8x1xf32>
      %69 = arith.subf %68, %67 : vector<8x1xf32>
      %c0_37 = arith.constant 0 : index
      %c0_38 = arith.constant 0 : index
      %70 = vector.load %arg8[%c0_37, %c0_38] : memref<8x1xf32, #tpu.memory_space<vmem>>, vector<8x1xf32>
      tpu.vector_store %arg8[%c0_37, %c0_38], %69 {strides = array<i32>} : memref<8x1xf32, #tpu.memory_space<vmem>>, vector<8x1xf32>,
    } else {
    }
    return
  }
  func.func @transform_0(%arg0: i32, %arg1: i32) -> (i32, i32, i32) {
    %c0_i32 = arith.constant 0 : i32
    %c0_i32_0 = arith.constant 0 : i32
    return %arg0, %arg1, %c0_i32 : i32, i32, i32
  }
  func.func @transform_1(%arg0: i32, %arg1: i32) -> (i32, i32) {
    %c0_i32 = arith.constant 0 : i32
    return %arg0, %arg1 : i32, i32
  }
  func.func @transform_2(%arg0: i32, %arg1: i32) -> (i32, i32) {
    %c0_i32 = arith.constant 0 : i32
    %c0_i32_0 = arith.constant 0 : i32
    %c0_i32_1 = arith.constant 0 : i32
    return %c0_i32, %c0_i32_0 : i32, i32
  }
  func.func @transform_3(%arg0: i32, %arg1: i32) -> (i32, i32) {
    %c0_i32 = arith.constant 0 : i32
    %c0_i32_0 = arith.constant 0 : i32
    %c0_i32_1 = arith.constant 0 : i32
    return %c0_i32, %c0_i32_0 : i32, i32
  }
  func.func @transform_4(%arg0: i32, %arg1: i32) -> (i32, i32) {
    %c0_i32 = arith.constant 0 : i32
    %c0_i32_0 = arith.constant 0 : i32
    return %arg0, %c0_i32 : i32, i32
  }
  func.func @transform_5(%arg0: i32, %arg1: i32) -> (i32, i32) {
    %c0_i32 = arith.constant 0 : i32
    %c0_i32_0 = arith.constant 0 : i32
    return %arg0, %c0_i32 : i32, i32
  }
  func.func @transform_6(%arg0: i32, %arg1: i32) -> (i32, i32) {
    %c0_i32 = arith.constant 0 : i32
    %c0_i32_0 = arith.constant 0 : i32
    return %arg0, %c0_i32 : i32, i32
  }
}

</mosaic_0001>

<llo_original>
// kernel: tpu_custom_call.1
$region0: #{tpu_custom_call.1}
  #allocation0 [shape = 'u32[]', space=smem, size = 0x4, offset = 0x4, fixed_abs, tag = 'smem constant byte address 0x4 - core index']
  #allocation1 [shape = 'u32[144,128]{1,0:T(1,128)}', space=vmem, size = 0x12000, scoped, tag = 'internal scratch']
  #allocation2 [shape = 'f32[8,128]{1,0:T(8,128)}', space=vmem, size = 0x1000, scoped, tag = 'scratch operand']
  #allocation3 [shape = 'f32[8,1]{1,0:T(8,128)}', space=vmem, size = 0x1000, scoped, tag = 'scratch operand']
  #allocation13 [shape = 's32[]', space=sflag, size = 0x4, offset = 0, fixed_abs, tag = 'sflag constant byte address 0x0 - dummy sync flag']
  %s0 = inlined_call_operand.hbm [shape: bf16[16,256,128], index: 0, kind: input, shape index: {}]
  %s1 = inlined_call_operand.hbm [shape: f32[16,256], index: 1, kind: input, shape index: {}]
  %s2 = inlined_call_operand.hbm [shape: f32[128,128], index: 2, kind: input, shape index: {}]
  %s3 = inlined_call_operand.vmem [shape: f32[1,128], index: 3, kind: input, shape index: {}]
  %s4 = inlined_call_operand.hbm [shape: f32[16,128], index: 4, kind: input, shape index: {}]
  %s5 = inlined_call_operand.hbm [shape: f32[16,128], index: 5, kind: output, shape index: {0}]
  %s6 = inlined_call_operand.vmem [shape: f32[16,1], index: 6, kind: output, shape index: {1}]
  %7 = xla_tuple %s5, %s6
  %s8 = sld [smem:[#allocation0]]
  $region85: #{tpu_custom_call.1} parent=0
    _
  %s10 = ssub.s32 1, %s8
  %s11 = scalar_select 0, %s10, %s8
  $region1: #{tpu_custom_call.1} parent=0
    #allocation4 [shape = 'u8[524288]{0}', space=vmem, size = 0x80000, scoped, tag = 'input window, operand 0']
    #allocation5 [shape = 's32[2]{0}', space=sflag, size = 0x8, scoped, tag = 'scoped memory for tpu_custom_call.1']
    #allocation6 [shape = 's32[2]{0}', space=sflag, size = 0x8, scoped, tag = 'scoped memory for tpu_custom_call.1']
    #allocation7 [shape = 'u8[8192]{0}', space=vmem, size = 0x2000, scoped, tag = 'input window, operand 1']
    #allocation8 [shape = 's32[2]{0}', space=sflag, size = 0x8, scoped, tag = 'scoped memory for tpu_custom_call.1']
    #allocation9 [shape = 'u8[65536]{0}', space=vmem, size = 0x10000, scoped, tag = 'input window, operand 2, single buffered']
    #allocation10 [shape = 'u8[8192]{0}', space=vmem, size = 0x2000, scoped, tag = 'input window, operand 4']
    #allocation11 [shape = 's32[2]{0}', space=sflag, size = 0x8, scoped, tag = 'scoped memory for tpu_custom_call.1']
    #allocation12 [shape = 'u8[8192]{0}', space=vmem, size = 0x2000, scoped, tag = 'output window, operand 0']
    %12 = vsyncpa [#allocation5], 0
    %s13 = scalar_lea.sflag [#allocation5], 1
    %14 = vsyncpa %s13, 0
    %15 = vsyncpa [#allocation8], 0
    %s16 = scalar_lea.sflag [#allocation8], 1
    %17 = vsyncpa %s16, 0
    %18 = vsyncpa [#allocation11], 0
    %s19 = scalar_lea.sflag [#allocation11], 1
    %20 = vsyncpa %s19, 0
    %21 = vsyncpa [#allocation6], 0
    %s22 = scalar_lea.sflag [#allocation6], 1
    %23 = vsyncpa %s22, 0
    loop: start=0, step=1, limit=6
    $region2: #{tpu_custom_call.1} parent=1 // loop_pre_header
      _
    $region3: #{tpu_custom_call.1} parent=1 // loop_header
      %s25 = sphi 0, %s29
      %p26 = scmp.ge.s32.totalorder %s25, 6
      %s32 = sphi 0, %s44
      %s33 = sphi 0, %s40
      %s34 = sphi 0, %s32
      %s35 = sphi 0, %s33
      %s36 = sphi 0, %s34
      %s37 = sphi 0, %s35
      %s49 = sphi 0, %s51
      %s52 = sphi 0, %s49
      %s53 = sphi 0, %s52
      %s69 = sphi 0, %s53
      %s77 = sphi 0, %s79
      %s80 = sphi 0, %s77
      %s81 = sphi 0, %s80
      %s97 = sphi 0, %s81
      %s101 = sphi 0, %s101
      %s103 = sphi 0, %s101
      %s104 = sphi 0, %s103
      %s118 = sphi 0, %s104
      %s122 = sphi 0, %s122
      %s124 = sphi 0, %s122
      %s125 = sphi 0, %s124
      %s139 = sphi 0, %s125
      %s145 = sphi 0, %s147
      %s148 = sphi 0, %s145
      %s149 = sphi 0, %s148
      %s165 = sphi 0, %s149
      %s171 = sphi 0, %s173
      %s174 = sphi 0, %s171
      %s175 = sphi 0, %s174
      %s191 = sphi 0, %s175
      %s197 = sphi 0, %s199
      %s200 = sphi 0, %s197
      %s201 = sphi 0, %s200
      %s217 = sphi 0, %s201
    $region4: #{tpu_custom_call.1} parent=1 // loop_header_branch
      %28 = sbr.rel (%p26) target = $region8
    $region5: #{tpu_custom_call.1} parent=1 // loop_body
      %s30 = ssub.s32 %s25, 1
      %s31 = ssub.s32 %s25, 2
      %s38 = sadd.s32 1, %s33
      %p39 = scmp.ge.s32.totalorder %s38, 2
      %s40 = scalar_select %p39, 0, %s38
      %s41 = sadd.s32 1, %s32
      %s42 = scalar_select %p39, %s41, %s32
      %p43 = scmp.ge.s32.totalorder %s42, 2
      %s44 = scalar_select %p43, 0, %s42
      %s45 = ssub.s32 %s32, %s44
      %s46 = ssub.s32 %s33, %s40
      %s47 = sor.u32 %s45, %s46
      %p48 = scmp.eq.s32.totalorder %s47, 0
      %s50 = sadd.s32 %s49, 1
      %s51 = scalar_select %p48, %s49, %s50
      %p54 = pneg %p48
      %p55 = scmp.eq.s32.totalorder %s25, 3
      %p56 = por %p54, %p55
      %p57 = scmp.ne.s32.totalorder %s49, %s52
      %p58 = scmp.eq.s32.totalorder %s25, 0
      %p59 = por %p57, %p58
      %p60 = scmp.ne.s32.totalorder %s49, %s52
      %p61 = scmp.eq.s32.totalorder %s30, 3
      %p62 = por %p60, %p61
      %p63 = scmp.ne.s32.totalorder %s52, %s53
      %p64 = scmp.eq.s32.totalorder %s30, 0
      %p65 = por %p63, %p64
      %p66 = scmp.ne.s32.totalorder %s52, %s53
      %p67 = scmp.eq.s32.totalorder %s31, 3
      %p68 = por %p66, %p67
      %p70 = scmp.ne.s32.totalorder %s53, %s69
      %p71 = scmp.eq.s32.totalorder %s31, 0
      %p72 = por %p70, %p71
      %s73 = ssub.s32 %s32, %s44
      %s74 = ssub.s32 %s33, %s40
      %s75 = sor.u32 %s73, %s74
      %p76 = scmp.eq.s32.totalorder %s75, 0
      %s78 = sadd.s32 %s77, 1
      %s79 = scalar_select %p76, %s77, %s78
      %p82 = pneg %p76
      %p83 = scmp.eq.s32.totalorder %s25, 3
      %p84 = por %p82, %p83
      %p85 = scmp.ne.s32.totalorder %s77, %s80
      %p86 = scmp.eq.s32.totalorder %s25, 0
      %p87 = por %p85, %p86
      %p88 = scmp.ne.s32.totalorder %s77, %s80
      %p89 = scmp.eq.s32.totalorder %s30, 3
      %p90 = por %p88, %p89
      %p91 = scmp.ne.s32.totalorder %s80, %s81
      %p92 = scmp.eq.s32.totalorder %s30, 0
      %p93 = por %p91, %p92
      %p94 = scmp.ne.s32.totalorder %s80, %s81
      %p95 = scmp.eq.s32.totalorder %s31, 3
      %p96 = por %p94, %p95
      %p98 = scmp.ne.s32.totalorder %s81, %s97
      %p99 = scmp.eq.s32.totalorder %s31, 0
      %p100 = por %p98, %p99
      %s102 = sadd.s32 %s101, 1
      %p105 = scmp.eq.s32.totalorder %s25, 3
      %p106 = scmp.ne.s32.totalorder %s101, %s103
      %p107 = scmp.eq.s32.totalorder %s25, 0
      %p108 = por %p106, %p107
      %p109 = scmp.ne.s32.totalorder %s101, %s103
      %p110 = scmp.eq.s32.totalorder %s30, 3
      %p111 = por %p109, %p110
      %p112 = scmp.ne.s32.totalorder %s103, %s104
      %p113 = scmp.eq.s32.totalorder %s30, 0
      %p114 = por %p112, %p113
      %p115 = scmp.ne.s32.totalorder %s103, %s104
      %p116 = scmp.eq.s32.totalorder %s31, 3
      %p117 = por %p115, %p116
      %p119 = scmp.ne.s32.totalorder %s104, %s118
      %p120 = scmp.eq.s32.totalorder %s31, 0
      %p121 = por %p119, %p120
      %s123 = sadd.s32 %s122, 1
      %p126 = scmp.eq.s32.totalorder %s25, 3
      %p127 = scmp.ne.s32.totalorder %s122, %s124
      %p128 = scmp.eq.s32.totalorder %s25, 0
      %p129 = por %p127, %p128
      %p130 = scmp.ne.s32.totalorder %s122, %s124
      %p131 = scmp.eq.s32.totalorder %s30, 3
      %p132 = por %p130, %p131
      %p133 = scmp.ne.s32.totalorder %s124, %s125
      %p134 = scmp.eq.s32.totalorder %s30, 0
      %p135 = por %p133, %p134
      %p136 = scmp.ne.s32.totalorder %s124, %s125
      %p137 = scmp.eq.s32.totalorder %s31, 3
      %p138 = por %p136, %p137
      %p140 = scmp.ne.s32.totalorder %s125, %s139
      %p141 = scmp.eq.s32.totalorder %s31, 0
      %p142 = por %p140, %p141
      %s143 = ssub.s32 %s32, %s44
      %p144 = scmp.eq.s32.totalorder %s143, 0
      %s146 = sadd.s32 %s145, 1
      %s147 = scalar_select %p144, %s145, %s146
      %p150 = pneg %p144
      %p151 = scmp.eq.s32.totalorder %s25, 3
      %p152 = por %p150, %p151
      %p153 = scmp.ne.s32.totalorder %s145, %s148
      %p154 = scmp.eq.s32.totalorder %s25, 0
      %p155 = por %p153, %p154
      %p156 = scmp.ne.s32.totalorder %s145, %s148
      %p157 = scmp.eq.s32.totalorder %s30, 3
      %p158 = por %p156, %p157
      %p159 = scmp.ne.s32.totalorder %s148, %s149
      %p160 = scmp.eq.s32.totalorder %s30, 0
      %p161 = por %p159, %p160
      %p162 = scmp.ne.s32.totalorder %s148, %s149
      %p163 = scmp.eq.s32.totalorder %s31, 3
      %p164 = por %p162, %p163
      %p166 = scmp.ne.s32.totalorder %s149, %s165
      %p167 = scmp.eq.s32.totalorder %s31, 0
      %p168 = por %p166, %p167
      %s169 = ssub.s32 %s32, %s44
      %p170 = scmp.eq.s32.totalorder %s169, 0
      %s172 = sadd.s32 %s171, 1
      %s173 = scalar_select %p170, %s171, %s172
      %p176 = pneg %p170
      %p177 = scmp.eq.s32.totalorder %s25, 3
      %p178 = por %p176, %p177
      %p179 = scmp.ne.s32.totalorder %s171, %s174
      %p180 = scmp.eq.s32.totalorder %s25, 0
      %p181 = por %p179, %p180
      %p182 = scmp.ne.s32.totalorder %s171, %s174
      %p183 = scmp.eq.s32.totalorder %s30, 3
      %p184 = por %p182, %p183
      %p185 = scmp.ne.s32.totalorder %s174, %s175
      %p186 = scmp.eq.s32.totalorder %s30, 0
      %p187 = por %p185, %p186
      %p188 = scmp.ne.s32.totalorder %s174, %s175
      %p189 = scmp.eq.s32.totalorder %s31, 3
      %p190 = por %p188, %p189
      %p192 = scmp.ne.s32.totalorder %s175, %s191
      %p193 = scmp.eq.s32.totalorder %s31, 0
      %p194 = por %p192, %p193
      %s195 = ssub.s32 %s32, %s44
      %p196 = scmp.eq.s32.totalorder %s195, 0
      %s198 = sadd.s32 %s197, 1
      %s199 = scalar_select %p196, %s197, %s198
      %p202 = pneg %p196
      %p203 = scmp.eq.s32.totalorder %s25, 3
      %p204 = por %p202, %p203
      %p205 = scmp.ne.s32.totalorder %s197, %s200
      %p206 = scmp.eq.s32.totalorder %s25, 0
      %p207 = por %p205, %p206
      %p208 = scmp.ne.s32.totalorder %s197, %s200
      %p209 = scmp.eq.s32.totalorder %s30, 3
      %p210 = por %p208, %p209
      %p211 = scmp.ne.s32.totalorder %s200, %s201
      %p212 = scmp.eq.s32.totalorder %s30, 0
      %p213 = por %p211, %p212
      %p214 = scmp.ne.s32.totalorder %s200, %s201
      %p215 = scmp.eq.s32.totalorder %s31, 3
      %p216 = por %p214, %p215
      %p218 = scmp.ne.s32.totalorder %s201, %s217
      %p219 = scmp.eq.s32.totalorder %s31, 0
      %p220 = por %p218, %p219
      %p221 = scmp.le.s32.totalorder 1, %s25
      %p222 = scmp.lt.s32.totalorder %s25, 5
      %p223 = pnand %p221, %p222
      %p224 = pneg %p223
      // Predicated region
      $region9: #{tpu_custom_call.1} parent=5 // pred_check
        _
      $region10: #{tpu_custom_call.1} parent=5 // pred_check_branch
        %226 = sbr.rel (%p223) target = $region12
      $region11: #{tpu_custom_call.1} parent=5 // pred_region
        %s227 = ssub.s32 %s25, 1
        // Predicated region
        $region13: #{tpu_custom_call.1} parent=11 // pred_check
          %p228 = pneg %p114
        $region14: #{tpu_custom_call.1} parent=11 // pred_check_branch
          %230 = sbr.rel (%p228) target = $region16
        $region15: #{tpu_custom_call.1} parent=11 // pred_region
          %s232 = ssub.s32 2048, 2048
          %233 = vsyncadd [#allocation8], %s232
          %s234 = sshll.u32 [#allocation9], 4
          %s235 = int_to_ptr.vmem [resolvable:$true] %s234
          %240 = dma.hbm_to_vmem [thread:$0]  %s2, 2048, %s235, [#allocation8], 128, 128, 8
        $region16: #{tpu_custom_call.1} parent=11 // pred_fallthru
          _
        // Predicated region
        $region17: #{tpu_custom_call.1} parent=11 // pred_check
          %p241 = pneg %p135
        $region18: #{tpu_custom_call.1} parent=11 // pred_check_branch
          %243 = sbr.rel (%p241) target = $region20
        $region19: #{tpu_custom_call.1} parent=11 // pred_region
          _
        $region20: #{tpu_custom_call.1} parent=11 // pred_fallthru
          _
      $region12: #{tpu_custom_call.1} parent=5 // pred_fallthru
        _
      %p244 = scmp.lt.s32.totalorder %s25, 4
      // Predicated region
      $region21: #{tpu_custom_call.1} parent=5 // pred_check
        %p245 = pneg %p244
      $region22: #{tpu_custom_call.1} parent=5 // pred_check_branch
        %247 = sbr.rel (%p245) target = $region24
      $region23: #{tpu_custom_call.1} parent=5 // pred_region
        // Predicated region
        $region25: #{tpu_custom_call.1} parent=23 // pred_check
          %p248 = pneg %p59
        $region26: #{tpu_custom_call.1} parent=23 // pred_check_branch
          %250 = sbr.rel (%p248) target = $region28
        $region27: #{tpu_custom_call.1} parent=23 // pred_region
          #allocation14 [shape = 'u32[6]{0}', space=smem, size = 0x18, scoped, tag = 'DMA stride descriptor']
          %s251 = sand.u32 %s49, 1
          %s252 = scalar_lea.sflag [#allocation5], %s251
          %s253 = sand.u32 %s49, 1
          %s254 = smul.addr %s253, 512
          %s255 = scalar_lea.vmem [#allocation4], %s254
          %s256 = smul.u32 8, %s32
          %s257 = smul.u32 16, %s33
          %s259 = ssub.s32 8192, 8192
          %260 = vsyncadd %s252, %s259
          %s261 = smul.addr %s256, 32
          %s262 = sadd.s32 %s257, %s261
          %s263 = smul.addr %s262, 64
          %s264 = scalar_lea.hbm %s0, %s263
          %s266 = sshll.u32 1, 14
          %s267 = sxor.u32 4294967295, %s266
          %s269 = sld [smem:[#allocation0]]
          %s270 = sadd.s32 2, %s269
          %s272 = sshll.u32 7, 26
          %s273 = sxor.u32 4294967295, %s272
          %s274 = sand.u32 0, %s273
          %s275 = sshll.u32 %s270, 26
          %s276 = sor.u32 %s274, %s275
          %s277 = sshll.u32 %s255, 4
          %s278 = int_to_ptr.vmem [resolvable:$true] %s277
          %284 = sst [smem:[#allocation14]] 2048
          %s285 = scalar_lea.smem [#allocation14], 1
          %286 = sst [smem:[%s285]] 1024
          %s287 = scalar_lea.smem [#allocation14], 2
          %288 = sst [smem:[%s287]] 16
          %s289 = scalar_lea.smem [#allocation14], 3
          %290 = sst [smem:[%s289]] 64
          %s291 = scalar_lea.smem [#allocation14], 4
          %292 = sst [smem:[%s291]] 64
          %s293 = scalar_lea.smem [#allocation14], 5
          %294 = sst [smem:[%s293]] 4
          %296 = dma.general %s264, 8192, %s278, %s252, [#allocation13], [#allocation14], %s276, 0
        $region28: #{tpu_custom_call.1} parent=23 // pred_fallthru
          _
        // Predicated region
        $region29: #{tpu_custom_call.1} parent=23 // pred_check
          %p297 = pneg %p87
        $region30: #{tpu_custom_call.1} parent=23 // pred_check_branch
          %299 = sbr.rel (%p297) target = $region32
        $region31: #{tpu_custom_call.1} parent=23 // pred_region
          %s300 = sand.u32 %s25, 1
          %s301 = scalar_lea.sflag [#allocation8], %s300
          %s302 = sand.u32 %s77, 1
          %s303 = smul.addr %s302, 8
          %s304 = scalar_lea.vmem [#allocation7], %s303
          %s306 = ssub.s32 128, 128
          %307 = vsyncadd %s301, %s306
          %s308 = smul.addr %s32, 2
          %s309 = sadd.s32 %s33, %s308
          %s310 = smul.addr %s309, 128
          %s311 = scalar_lea.hbm %s1, %s310
          %s313 = sshll.u32 %s304, 4
          %s314 = int_to_ptr.vmem [resolvable:$true] %s313
          %316 = dma.hbm_to_vmem [thread:$0]  %s311, 128, %s314, %s301
        $region32: #{tpu_custom_call.1} parent=23 // pred_fallthru
          _
        // Predicated region
        $region33: #{tpu_custom_call.1} parent=23 // pred_check
          %p317 = pneg %p155
        $region34: #{tpu_custom_call.1} parent=23 // pred_check_branch
          %319 = sbr.rel (%p317) target = $region36
        $region35: #{tpu_custom_call.1} parent=23 // pred_region
          %s320 = sand.u32 %s145, 1
          %s321 = scalar_lea.sflag [#allocation11], %s320
          %s322 = sand.u32 %s145, 1
          %s323 = smul.addr %s322, 8
          %s324 = scalar_lea.vmem [#allocation10], %s323
          %s326 = ssub.s32 128, 128
          %327 = vsyncadd %s321, %s326
          %s328 = smul.addr %s32, 128
          %s329 = scalar_lea.hbm %s4, %s328
          %s331 = sshll.u32 %s324, 4
          %s332 = int_to_ptr.vmem [resolvable:$true] %s331
          %334 = dma.hbm_to_vmem [thread:$0]  %s329, 128, %s332, %s321
        $region36: #{tpu_custom_call.1} parent=23 // pred_fallthru
          _
      $region24: #{tpu_custom_call.1} parent=5 // pred_fallthru
        _
      %p335 = scmp.le.s32.totalorder 1, %s25
      %p336 = scmp.lt.s32.totalorder %s25, 5
      %p337 = pnand %p335, %p336
      %p338 = pneg %p337
      // Predicated region
      $region37: #{tpu_custom_call.1} parent=5 // pred_check
        _
      $region38: #{tpu_custom_call.1} parent=5 // pred_check_branch
        %340 = sbr.rel (%p337) target = $region40
      $region39: #{tpu_custom_call.1} parent=5 // pred_region
        %s341 = ssub.s32 %s25, 1
        %s342 = sand.u32 %s52, 1
        %s343 = scalar_lea.sflag [#allocation5], %s342
        %s344 = sand.u32 %s52, 1
        %s345 = smul.addr %s344, 512
        %s346 = scalar_lea.vmem [#allocation4], %s345
        // Predicated region
        $region41: #{tpu_custom_call.1} parent=39 // pred_check
          %p347 = pneg %p65
        $region42: #{tpu_custom_call.1} parent=39 // pred_check_branch
          %349 = sbr.rel (%p347) target = $region44
        $region43: #{tpu_custom_call.1} parent=39 // pred_region
          %350 = dma.done %s343, 8192
        $region44: #{tpu_custom_call.1} parent=39 // pred_fallthru
          _
        %s351 = sand.u32 %s30, 1
        %s352 = scalar_lea.sflag [#allocation8], %s351
        %s353 = sand.u32 %s80, 1
        %s354 = smul.addr %s353, 8
        %s355 = scalar_lea.vmem [#allocation7], %s354
        // Predicated region
        $region45: #{tpu_custom_call.1} parent=39 // pred_check
          %p356 = pneg %p93
        $region46: #{tpu_custom_call.1} parent=39 // pred_check_branch
          %358 = sbr.rel (%p356) target = $region48
        $region47: #{tpu_custom_call.1} parent=39 // pred_region
          %359 = dma.done %s352, 128
        $region48: #{tpu_custom_call.1} parent=39 // pred_fallthru
          _
        // Predicated region
        $region49: #{tpu_custom_call.1} parent=39 // pred_check
          %p360 = pneg %p114
        $region50: #{tpu_custom_call.1} parent=39 // pred_check_branch
          %362 = sbr.rel (%p360) target = $region52
        $region51: #{tpu_custom_call.1} parent=39 // pred_region
          %363 = dma.done [#allocation8], 2048
        $region52: #{tpu_custom_call.1} parent=39 // pred_fallthru
          _
        %s364 = sand.u32 %s148, 1
        %s365 = scalar_lea.sflag [#allocation11], %s364
        %s366 = sand.u32 %s148, 1
        %s367 = smul.addr %s366, 8
        %s368 = scalar_lea.vmem [#allocation10], %s367
        // Predicated region
        $region53: #{tpu_custom_call.1} parent=39 // pred_check
          %p369 = pneg %p161
        $region54: #{tpu_custom_call.1} parent=39 // pred_check_branch
          %371 = sbr.rel (%p369) target = $region56
        $region55: #{tpu_custom_call.1} parent=39 // pred_region
          %372 = dma.done %s365, 128
        $region56: #{tpu_custom_call.1} parent=39 // pred_fallthru
          _
        %s373 = sand.u32 %s52, 1
        %s374 = scalar_lea.sflag [#allocation5], %s373
        %s375 = sand.u32 %s52, 1
        %s376 = smul.addr %s375, 512
        %s377 = scalar_lea.vmem [#allocation4], %s376
        %p378 = pneg %p65
        %p379 = pneg %p62
        %s380 = sand.u32 %s30, 1
        %s381 = scalar_lea.sflag [#allocation8], %s380
        %s382 = sand.u32 %s80, 1
        %s383 = smul.addr %s382, 8
        %s384 = scalar_lea.vmem [#allocation7], %s383
        %p385 = pneg %p93
        %p386 = pneg %p90
        %p387 = pneg %p114
        %p388 = pneg %p111
        %p389 = pneg %p135
        %p390 = pneg %p132
        %s391 = sand.u32 %s148, 1
        %s392 = scalar_lea.sflag [#allocation11], %s391
        %s393 = sand.u32 %s148, 1
        %s394 = smul.addr %s393, 8
        %s395 = scalar_lea.vmem [#allocation10], %s394
        %p396 = pneg %p161
        %p397 = pneg %p158
        %p398 = pneg %p187
        %p399 = pneg %p184
        %s400 = sand.u32 %s174, 1
        %s401 = scalar_lea.sflag [#allocation6], %s400
        %s402 = sand.u32 %s174, 1
        %s403 = smul.addr %s402, 8
        %s404 = scalar_lea.vmem [#allocation12], %s403
        %p405 = pneg %p213
        %p406 = pneg %p210
        %p407 = scmp.lt.s32.totalorder %s34, 1
        %s408 = scalar_select %p407, %s34, 1
        %s409 = smul.addr %s408, 8
        %s410 = scalar_lea.vmem %s6, %s409
        %s411 = smul.u32 8, %s34
        %s412 = smul.u32 16, %s35
        %p413 = scmp.lt.s32.totalorder %s34, 1
        %s414 = scalar_select %p413, %s34, 1
        %s415 = smul.addr %s414, 8
        %s416 = scalar_lea.vmem %s6, %s415
        %p417 = scmp.eq.s32.totalorder %s35, 0
        // Predicated region
        $region57: #{tpu_custom_call.1} parent=39 // pred_check
          %p418 = pneg %p417
        $region58: #{tpu_custom_call.1} parent=39 // pred_check_branch
          %420 = sbr.rel (%p418) target = $region60
        $region59: #{tpu_custom_call.1} parent=39 // pred_region
          %421 = vst [vmem:[#allocation2] sm:$0xff] 0.0
          %vm422 = vcmask 7168
          %423 = vst.msk [vmem:[#allocation3] sm:$0xff] %vm422, 0.0
        $region60: #{tpu_custom_call.1} parent=39 // pred_fallthru
          _
        %v424 = vld [vmem:[%s355] sm:$0xff]
        %v425 = vld [vmem:[%s346] sm:$0xf]
        %v426 = vld [vmem:[%s346 + $0x4] sm:$0xf]
        %v427 = vld [vmem:[%s346 + $0x8] sm:$0xf]
        %v428 = vld [vmem:[%s346 + $0xc] sm:$0xf]
        %v429 = vld [vmem:[%s346 + $0x10] sm:$0xf]
        %v430 = vld [vmem:[%s346 + $0x14] sm:$0xf]
        %v431 = vld [vmem:[%s346 + $0x18] sm:$0xf]
        %v432 = vld [vmem:[%s346 + $0x1c] sm:$0xf]
        %v433 = vld [vmem:[%s346 + $0x20] sm:$0xf]
        %v434 = vld [vmem:[%s346 + $0x24] sm:$0xf]
        %v435 = vld [vmem:[%s346 + $0x28] sm:$0xf]
        %v436 = vld [vmem:[%s346 + $0x2c] sm:$0xf]
        %v437 = vld [vmem:[%s346 + $0x30] sm:$0xf]
        %v438 = vld [vmem:[%s346 + $0x34] sm:$0xf]
        %v439 = vld [vmem:[%s346 + $0x38] sm:$0xf]
        %v440 = vld [vmem:[%s346 + $0x3c] sm:$0xf]
        %v441 = vld [vmem:[%s346 + $0x40] sm:$0xf]
        %v442 = vld [vmem:[%s346 + $0x44] sm:$0xf]
        %v443 = vld [vmem:[%s346 + $0x48] sm:$0xf]
        %v444 = vld [vmem:[%s346 + $0x4c] sm:$0xf]
        %v445 = vld [vmem:[%s346 + $0x50] sm:$0xf]
        %v446 = vld [vmem:[%s346 + $0x54] sm:$0xf]
        %v447 = vld [vmem:[%s346 + $0x58] sm:$0xf]
        %v448 = vld [vmem:[%s346 + $0x5c] sm:$0xf]
        %v449 = vld [vmem:[%s346 + $0x60] sm:$0xf]
        %v450 = vld [vmem:[%s346 + $0x64] sm:$0xf]
        %v451 = vld [vmem:[%s346 + $0x68] sm:$0xf]
        %v452 = vld [vmem:[%s346 + $0x6c] sm:$0xf]
        %v453 = vld [vmem:[%s346 + $0x70] sm:$0xf]
        %v454 = vld [vmem:[%s346 + $0x74] sm:$0xf]
        %v455 = vld [vmem:[%s346 + $0x78] sm:$0xf]
        %v456 = vld [vmem:[%s346 + $0x7c] sm:$0xf]
        %v457 = vld [vmem:[%s346 + $0x80] sm:$0xf]
        %v458 = vld [vmem:[%s346 + $0x84] sm:$0xf]
        %v459 = vld [vmem:[%s346 + $0x88] sm:$0xf]
        %v460 = vld [vmem:[%s346 + $0x8c] sm:$0xf]
        %v461 = vld [vmem:[%s346 + $0x90] sm:$0xf]
        %v462 = vld [vmem:[%s346 + $0x94] sm:$0xf]
        %v463 = vld [vmem:[%s346 + $0x98] sm:$0xf]
        %v464 = vld [vmem:[%s346 + $0x9c] sm:$0xf]
        %v465 = vld [vmem:[%s346 + $0xa0] sm:$0xf]
        %v466 = vld [vmem:[%s346 + $0xa4] sm:$0xf]
        %v467 = vld [vmem:[%s346 + $0xa8] sm:$0xf]
        %v468 = vld [vmem:[%s346 + $0xac] sm:$0xf]
        %v469 = vld [vmem:[%s346 + $0xb0] sm:$0xf]
        %v470 = vld [vmem:[%s346 + $0xb4] sm:$0xf]
        %v471 = vld [vmem:[%s346 + $0xb8] sm:$0xf]
        %v472 = vld [vmem:[%s346 + $0xbc] sm:$0xf]
        %v473 = vld [vmem:[%s346 + $0xc0] sm:$0xf]
        %v474 = vld [vmem:[%s346 + $0xc4] sm:$0xf]
        %v475 = vld [vmem:[%s346 + $0xc8] sm:$0xf]
        %v476 = vld [vmem:[%s346 + $0xcc] sm:$0xf]
        %v477 = vld [vmem:[%s346 + $0xd0] sm:$0xf]
        %v478 = vld [vmem:[%s346 + $0xd4] sm:$0xf]
        %v479 = vld [vmem:[%s346 + $0xd8] sm:$0xf]
        %v480 = vld [vmem:[%s346 + $0xdc] sm:$0xf]
        %v481 = vld [vmem:[%s346 + $0xe0] sm:$0xf]
        %v482 = vld [vmem:[%s346 + $0xe4] sm:$0xf]
        %v483 = vld [vmem:[%s346 + $0xe8] sm:$0xf]
        %v484 = vld [vmem:[%s346 + $0xec] sm:$0xf]
        %v485 = vld [vmem:[%s346 + $0xf0] sm:$0xf]
        %v486 = vld [vmem:[%s346 + $0xf4] sm:$0xf]
        %v487 = vld [vmem:[%s346 + $0xf8] sm:$0xf]
        %v488 = vld [vmem:[%s346 + $0xfc] sm:$0xf]
        %v489 = vld [vmem:[%s346 + $0x100] sm:$0xf]
        %v490 = vld [vmem:[%s346 + $0x104] sm:$0xf]
        %v491 = vld [vmem:[%s346 + $0x108] sm:$0xf]
        %v492 = vld [vmem:[%s346 + $0x10c] sm:$0xf]
        %v493 = vld [vmem:[%s346 + $0x110] sm:$0xf]
        %v494 = vld [vmem:[%s346 + $0x114] sm:$0xf]
        %v495 = vld [vmem:[%s346 + $0x118] sm:$0xf]
        %v496 = vld [vmem:[%s346 + $0x11c] sm:$0xf]
        %v497 = vld [vmem:[%s346 + $0x120] sm:$0xf]
        %v498 = vld [vmem:[%s346 + $0x124] sm:$0xf]
        %v499 = vld [vmem:[%s346 + $0x128] sm:$0xf]
        %v500 = vld [vmem:[%s346 + $0x12c] sm:$0xf]
        %v501 = vld [vmem:[%s346 + $0x130] sm:$0xf]
        %v502 = vld [vmem:[%s346 + $0x134] sm:$0xf]
        %v503 = vld [vmem:[%s346 + $0x138] sm:$0xf]
        %v504 = vld [vmem:[%s346 + $0x13c] sm:$0xf]
        %v505 = vld [vmem:[%s346 + $0x140] sm:$0xf]
        %v506 = vld [vmem:[%s346 + $0x144] sm:$0xf]
        %v507 = vld [vmem:[%s346 + $0x148] sm:$0xf]
        %v508 = vld [vmem:[%s346 + $0x14c] sm:$0xf]
        %v509 = vld [vmem:[%s346 + $0x150] sm:$0xf]
        %v510 = vld [vmem:[%s346 + $0x154] sm:$0xf]
        %v511 = vld [vmem:[%s346 + $0x158] sm:$0xf]
        %v512 = vld [vmem:[%s346 + $0x15c] sm:$0xf]
        %v513 = vld [vmem:[%s346 + $0x160] sm:$0xf]
        %v514 = vld [vmem:[%s346 + $0x164] sm:$0xf]
        %v515 = vld [vmem:[%s346 + $0x168] sm:$0xf]
        %v516 = vld [vmem:[%s346 + $0x16c] sm:$0xf]
        %v517 = vld [vmem:[%s346 + $0x170] sm:$0xf]
        %v518 = vld [vmem:[%s346 + $0x174] sm:$0xf]
        %v519 = vld [vmem:[%s346 + $0x178] sm:$0xf]
        %v520 = vld [vmem:[%s346 + $0x17c] sm:$0xf]
        %v521 = vld [vmem:[%s346 + $0x180] sm:$0xf]
        %v522 = vld [vmem:[%s346 + $0x184] sm:$0xf]
        %v523 = vld [vmem:[%s346 + $0x188] sm:$0xf]
        %v524 = vld [vmem:[%s346 + $0x18c] sm:$0xf]
        %v525 = vld [vmem:[%s346 + $0x190] sm:$0xf]
        %v526 = vld [vmem:[%s346 + $0x194] sm:$0xf]
        %v527 = vld [vmem:[%s346 + $0x198] sm:$0xf]
        %v528 = vld [vmem:[%s346 + $0x19c] sm:$0xf]
        %v529 = vld [vmem:[%s346 + $0x1a0] sm:$0xf]
        %v530 = vld [vmem:[%s346 + $0x1a4] sm:$0xf]
        %v531 = vld [vmem:[%s346 + $0x1a8] sm:$0xf]
        %v532 = vld [vmem:[%s346 + $0x1ac] sm:$0xf]
        %v533 = vld [vmem:[%s346 + $0x1b0] sm:$0xf]
        %v534 = vld [vmem:[%s346 + $0x1b4] sm:$0xf]
        %v535 = vld [vmem:[%s346 + $0x1b8] sm:$0xf]
        %v536 = vld [vmem:[%s346 + $0x1bc] sm:$0xf]
        %v537 = vld [vmem:[%s346 + $0x1c0] sm:$0xf]
        %v538 = vld [vmem:[%s346 + $0x1c4] sm:$0xf]
        %v539 = vld [vmem:[%s346 + $0x1c8] sm:$0xf]
        %v540 = vld [vmem:[%s346 + $0x1cc] sm:$0xf]
        %v541 = vld [vmem:[%s346 + $0x1d0] sm:$0xf]
        %v542 = vld [vmem:[%s346 + $0x1d4] sm:$0xf]
        %v543 = vld [vmem:[%s346 + $0x1d8] sm:$0xf]
        %v544 = vld [vmem:[%s346 + $0x1dc] sm:$0xf]
        %v545 = vld [vmem:[%s346 + $0x1e0] sm:$0xf]
        %v546 = vld [vmem:[%s346 + $0x1e4] sm:$0xf]
        %v547 = vld [vmem:[%s346 + $0x1e8] sm:$0xf]
        %v548 = vld [vmem:[%s346 + $0x1ec] sm:$0xf]
        %v549 = vld [vmem:[%s346 + $0x1f0] sm:$0xf]
        %v550 = vld [vmem:[%s346 + $0x1f4] sm:$0xf]
        %v551 = vld [vmem:[%s346 + $0x1f8] sm:$0xf]
        %v552 = vld [vmem:[%s346 + $0x1fc] sm:$0xf]
        %v553 = vunpack.c.l.bf16 %v425
        %v554 = vunpack.c.l.bf16 %v426
        %v555 = vunpack.c.l.bf16 %v427
        %v556 = vunpack.c.l.bf16 %v428
        %v557 = vunpack.c.l.bf16 %v429
        %v558 = vunpack.c.l.bf16 %v430
        %v559 = vunpack.c.l.bf16 %v431
        %v560 = vunpack.c.l.bf16 %v432
        %v561 = vunpack.c.l.bf16 %v433
        %v562 = vunpack.c.l.bf16 %v434
        %v563 = vunpack.c.l.bf16 %v435
        %v564 = vunpack.c.l.bf16 %v436
        %v565 = vunpack.c.l.bf16 %v437
        %v566 = vunpack.c.l.bf16 %v438
        %v567 = vunpack.c.l.bf16 %v439
        %v568 = vunpack.c.l.bf16 %v440
        %v569 = vunpack.c.l.bf16 %v441
        %v570 = vunpack.c.l.bf16 %v442
        %v571 = vunpack.c.l.bf16 %v443
        %v572 = vunpack.c.l.bf16 %v444
        %v573 = vunpack.c.l.bf16 %v445
        %v574 = vunpack.c.l.bf16 %v446
        %v575 = vunpack.c.l.bf16 %v447
        %v576 = vunpack.c.l.bf16 %v448
        %v577 = vunpack.c.l.bf16 %v449
        %v578 = vunpack.c.l.bf16 %v450
        %v579 = vunpack.c.l.bf16 %v451
        %v580 = vunpack.c.l.bf16 %v452
        %v581 = vunpack.c.l.bf16 %v453
        %v582 = vunpack.c.l.bf16 %v454
        %v583 = vunpack.c.l.bf16 %v455
        %v584 = vunpack.c.l.bf16 %v456
        %v585 = vunpack.c.l.bf16 %v457
        %v586 = vunpack.c.l.bf16 %v458
        %v587 = vunpack.c.l.bf16 %v459
        %v588 = vunpack.c.l.bf16 %v460
        %v589 = vunpack.c.l.bf16 %v461
        %v590 = vunpack.c.l.bf16 %v462
        %v591 = vunpack.c.l.bf16 %v463
        %v592 = vunpack.c.l.bf16 %v464
        %v593 = vunpack.c.l.bf16 %v465
        %v594 = vunpack.c.l.bf16 %v466
        %v595 = vunpack.c.l.bf16 %v467
        %v596 = vunpack.c.l.bf16 %v468
        %v597 = vunpack.c.l.bf16 %v469
        %v598 = vunpack.c.l.bf16 %v470
        %v599 = vunpack.c.l.bf16 %v471
        %v600 = vunpack.c.l.bf16 %v472
        %v601 = vunpack.c.l.bf16 %v473
        %v602 = vunpack.c.l.bf16 %v474
        %v603 = vunpack.c.l.bf16 %v475
        %v604 = vunpack.c.l.bf16 %v476
        %v605 = vunpack.c.l.bf16 %v477
        %v606 = vunpack.c.l.bf16 %v478
        %v607 = vunpack.c.l.bf16 %v479
        %v608 = vunpack.c.l.bf16 %v480
        %v609 = vunpack.c.l.bf16 %v481
        %v610 = vunpack.c.l.bf16 %v482
        %v611 = vunpack.c.l.bf16 %v483
        %v612 = vunpack.c.l.bf16 %v484
        %v613 = vunpack.c.l.bf16 %v485
        %v614 = vunpack.c.l.bf16 %v486
        %v615 = vunpack.c.l.bf16 %v487
        %v616 = vunpack.c.l.bf16 %v488
        %v617 = vunpack.c.l.bf16 %v489
        %v618 = vunpack.c.l.bf16 %v490
        %v619 = vunpack.c.l.bf16 %v491
        %v620 = vunpack.c.l.bf16 %v492
        %v621 = vunpack.c.l.bf16 %v493
        %v622 = vunpack.c.l.bf16 %v494
        %v623 = vunpack.c.l.bf16 %v495
        %v624 = vunpack.c.l.bf16 %v496
        %v625 = vunpack.c.l.bf16 %v497
        %v626 = vunpack.c.l.bf16 %v498
        %v627 = vunpack.c.l.bf16 %v499
        %v628 = vunpack.c.l.bf16 %v500
        %v629 = vunpack.c.l.bf16 %v501
        %v630 = vunpack.c.l.bf16 %v502
        %v631 = vunpack.c.l.bf16 %v503
        %v632 = vunpack.c.l.bf16 %v504
        %v633 = vunpack.c.l.bf16 %v505
        %v634 = vunpack.c.l.bf16 %v506
        %v635 = vunpack.c.l.bf16 %v507
        %v636 = vunpack.c.l.bf16 %v508
        %v637 = vunpack.c.l.bf16 %v509
        %v638 = vunpack.c.l.bf16 %v510
        %v639 = vunpack.c.l.bf16 %v511
        %v640 = vunpack.c.l.bf16 %v512
        %v641 = vunpack.c.l.bf16 %v513
        %v642 = vunpack.c.l.bf16 %v514
        %v643 = vunpack.c.l.bf16 %v515
        %v644 = vunpack.c.l.bf16 %v516
        %v645 = vunpack.c.l.bf16 %v517
        %v646 = vunpack.c.l.bf16 %v518
        %v647 = vunpack.c.l.bf16 %v519
        %v648 = vunpack.c.l.bf16 %v520
        %v649 = vunpack.c.l.bf16 %v521
        %v650 = vunpack.c.l.bf16 %v522
        %v651 = vunpack.c.l.bf16 %v523
        %v652 = vunpack.c.l.bf16 %v524
        %v653 = vunpack.c.l.bf16 %v525
        %v654 = vunpack.c.l.bf16 %v526
        %v655 = vunpack.c.l.bf16 %v527
        %v656 = vunpack.c.l.bf16 %v528
        %v657 = vunpack.c.l.bf16 %v529
        %v658 = vunpack.c.l.bf16 %v530
        %v659 = vunpack.c.l.bf16 %v531
        %v660 = vunpack.c.l.bf16 %v532
        %v661 = vunpack.c.l.bf16 %v533
        %v662 = vunpack.c.l.bf16 %v534
        %v663 = vunpack.c.l.bf16 %v535
        %v664 = vunpack.c.l.bf16 %v536
        %v665 = vunpack.c.l.bf16 %v537
        %v666 = vunpack.c.l.bf16 %v538
        %v667 = vunpack.c.l.bf16 %v539
        %v668 = vunpack.c.l.bf16 %v540
        %v669 = vunpack.c.l.bf16 %v541
        %v670 = vunpack.c.l.bf16 %v542
        %v671 = vunpack.c.l.bf16 %v543
        %v672 = vunpack.c.l.bf16 %v544
        %v673 = vunpack.c.l.bf16 %v545
        %v674 = vunpack.c.l.bf16 %v546
        %v675 = vunpack.c.l.bf16 %v547
        %v676 = vunpack.c.l.bf16 %v548
        %v677 = vunpack.c.l.bf16 %v549
        %v678 = vunpack.c.l.bf16 %v550
        %v679 = vunpack.c.l.bf16 %v551
        %v680 = vunpack.c.l.bf16 %v552
        %v681 = vld [vmem:[#allocation2] sm:$0xff]
        %v682 = vlaneseq
        %v683 = vshrl.u32 %v682, 7
        %v684 = vsub.s32 0, %v683
        %v685 = vrot.slane %v424, %v684
        %687 = vbcast.lane.b32.xlu0 %v685, 256
        %v688 = vpop.permute.xlu0 %687
        %s690 = sor.u32 256, 8
        %691 = vbcast.lane.b32.xlu0 %v685, %s690
        %v692 = vpop.permute.xlu0 %691
        %s694 = sor.u32 256, 16
        %695 = vbcast.lane.b32.xlu0 %v685, %s694
        %v696 = vpop.permute.xlu0 %695
        %s698 = sor.u32 256, 24
        %699 = vbcast.lane.b32.xlu0 %v685, %s698
        %v700 = vpop.permute.xlu0 %699
        %s702 = sor.u32 256, 32
        %703 = vbcast.lane.b32.xlu0 %v685, %s702
        %v704 = vpop.permute.xlu0 %703
        %s706 = sor.u32 256, 40
        %707 = vbcast.lane.b32.xlu0 %v685, %s706
        %v708 = vpop.permute.xlu0 %707
        %s710 = sor.u32 256, 48
        %711 = vbcast.lane.b32.xlu0 %v685, %s710
        %v712 = vpop.permute.xlu0 %711
        %s714 = sor.u32 256, 56
        %715 = vbcast.lane.b32.xlu0 %v685, %s714
        %v716 = vpop.permute.xlu0 %715
        %s718 = sor.u32 256, 64
        %719 = vbcast.lane.b32.xlu0 %v685, %s718
        %v720 = vpop.permute.xlu0 %719
        %s722 = sor.u32 256, 72
        %723 = vbcast.lane.b32.xlu0 %v685, %s722
        %v724 = vpop.permute.xlu0 %723
        %s726 = sor.u32 256, 80
        %727 = vbcast.lane.b32.xlu0 %v685, %s726
        %v728 = vpop.permute.xlu0 %727
        %s730 = sor.u32 256, 88
        %731 = vbcast.lane.b32.xlu0 %v685, %s730
        %v732 = vpop.permute.xlu0 %731
        %s734 = sor.u32 256, 96
        %735 = vbcast.lane.b32.xlu0 %v685, %s734
        %v736 = vpop.permute.xlu0 %735
        %s738 = sor.u32 256, 104
        %739 = vbcast.lane.b32.xlu0 %v685, %s738
        %v740 = vpop.permute.xlu0 %739
        %s742 = sor.u32 256, 112
        %743 = vbcast.lane.b32.xlu0 %v685, %s742
        %v744 = vpop.permute.xlu0 %743
        %s746 = sor.u32 256, 120
        %747 = vbcast.lane.b32.xlu0 %v685, %s746
        %v748 = vpop.permute.xlu0 %747
        %v749 = vlaneseq
        %v750 = vshrl.u32 %v749, 7
        %v751 = vsub.s32 1, %v750
        %v752 = vrot.slane %v424, %v751
        %754 = vbcast.lane.b32.xlu0 %v752, 256
        %v755 = vpop.permute.xlu0 %754
        %s757 = sor.u32 256, 8
        %758 = vbcast.lane.b32.xlu0 %v752, %s757
        %v759 = vpop.permute.xlu0 %758
        %s761 = sor.u32 256, 16
        %762 = vbcast.lane.b32.xlu0 %v752, %s761
        %v763 = vpop.permute.xlu0 %762
        %s765 = sor.u32 256, 24
        %766 = vbcast.lane.b32.xlu0 %v752, %s765
        %v767 = vpop.permute.xlu0 %766
        %s769 = sor.u32 256, 32
        %770 = vbcast.lane.b32.xlu0 %v752, %s769
        %v771 = vpop.permute.xlu0 %770
        %s773 = sor.u32 256, 40
        %774 = vbcast.lane.b32.xlu0 %v752, %s773
        %v775 = vpop.permute.xlu0 %774
        %s777 = sor.u32 256, 48
        %778 = vbcast.lane.b32.xlu0 %v752, %s777
        %v779 = vpop.permute.xlu0 %778
        %s781 = sor.u32 256, 56
        %782 = vbcast.lane.b32.xlu0 %v752, %s781
        %v783 = vpop.permute.xlu0 %782
        %s785 = sor.u32 256, 64
        %786 = vbcast.lane.b32.xlu0 %v752, %s785
        %v787 = vpop.permute.xlu0 %786
        %s789 = sor.u32 256, 72
        %790 = vbcast.lane.b32.xlu0 %v752, %s789
        %v791 = vpop.permute.xlu0 %790
        %s793 = sor.u32 256, 80
        %794 = vbcast.lane.b32.xlu0 %v752, %s793
        %v795 = vpop.permute.xlu0 %794
        %s797 = sor.u32 256, 88
        %798 = vbcast.lane.b32.xlu0 %v752, %s797
        %v799 = vpop.permute.xlu0 %798
        %s801 = sor.u32 256, 96
        %802 = vbcast.lane.b32.xlu0 %v752, %s801
        %v803 = vpop.permute.xlu0 %802
        %s805 = sor.u32 256, 104
        %806 = vbcast.lane.b32.xlu0 %v752, %s805
        %v807 = vpop.permute.xlu0 %806
        %s809 = sor.u32 256, 112
        %810 = vbcast.lane.b32.xlu0 %v752, %s809
        %v811 = vpop.permute.xlu0 %810
        %s813 = sor.u32 256, 120
        %814 = vbcast.lane.b32.xlu0 %v752, %s813
        %v815 = vpop.permute.xlu0 %814
        %v816 = vlaneseq
        %v817 = vshrl.u32 %v816, 7
        %v818 = vsub.s32 2, %v817
        %v819 = vrot.slane %v424, %v818
        %821 = vbcast.lane.b32.xlu0 %v819, 256
        %v822 = vpop.permute.xlu0 %821
        %s824 = sor.u32 256, 8
        %825 = vbcast.lane.b32.xlu0 %v819, %s824
        %v826 = vpop.permute.xlu0 %825
        %s828 = sor.u32 256, 16
        %829 = vbcast.lane.b32.xlu0 %v819, %s828
        %v830 = vpop.permute.xlu0 %829
        %s832 = sor.u32 256, 24
        %833 = vbcast.lane.b32.xlu0 %v819, %s832
        %v834 = vpop.permute.xlu0 %833
        %s836 = sor.u32 256, 32
        %837 = vbcast.lane.b32.xlu0 %v819, %s836
        %v838 = vpop.permute.xlu0 %837
        %s840 = sor.u32 256, 40
        %841 = vbcast.lane.b32.xlu0 %v819, %s840
        %v842 = vpop.permute.xlu0 %841
        %s844 = sor.u32 256, 48
        %845 = vbcast.lane.b32.xlu0 %v819, %s844
        %v846 = vpop.permute.xlu0 %845
        %s848 = sor.u32 256, 56
        %849 = vbcast.lane.b32.xlu0 %v819, %s848
        %v850 = vpop.permute.xlu0 %849
        %s852 = sor.u32 256, 64
        %853 = vbcast.lane.b32.xlu0 %v819, %s852
        %v854 = vpop.permute.xlu0 %853
        %s856 = sor.u32 256, 72
        %857 = vbcast.lane.b32.xlu0 %v819, %s856
        %v858 = vpop.permute.xlu0 %857
        %s860 = sor.u32 256, 80
        %861 = vbcast.lane.b32.xlu0 %v819, %s860
        %v862 = vpop.permute.xlu0 %861
        %s864 = sor.u32 256, 88
        %865 = vbcast.lane.b32.xlu0 %v819, %s864
        %v866 = vpop.permute.xlu0 %865
        %s868 = sor.u32 256, 96
        %869 = vbcast.lane.b32.xlu0 %v819, %s868
        %v870 = vpop.permute.xlu0 %869
        %s872 = sor.u32 256, 104
        %873 = vbcast.lane.b32.xlu0 %v819, %s872
        %v874 = vpop.permute.xlu0 %873
        %s876 = sor.u32 256, 112
        %877 = vbcast.lane.b32.xlu0 %v819, %s876
        %v878 = vpop.permute.xlu0 %877
        %s880 = sor.u32 256, 120
        %881 = vbcast.lane.b32.xlu0 %v819, %s880
        %v882 = vpop.permute.xlu0 %881
        %v883 = vlaneseq
        %v884 = vshrl.u32 %v883, 7
        %v885 = vsub.s32 3, %v884
        %v886 = vrot.slane %v424, %v885
        %888 = vbcast.lane.b32.xlu0 %v886, 256
        %v889 = vpop.permute.xlu0 %888
        %s891 = sor.u32 256, 8
        %892 = vbcast.lane.b32.xlu0 %v886, %s891
        %v893 = vpop.permute.xlu0 %892
        %s895 = sor.u32 256, 16
        %896 = vbcast.lane.b32.xlu0 %v886, %s895
        %v897 = vpop.permute.xlu0 %896
        %s899 = sor.u32 256, 24
        %900 = vbcast.lane.b32.xlu0 %v886, %s899
        %v901 = vpop.permute.xlu0 %900
        %s903 = sor.u32 256, 32
        %904 = vbcast.lane.b32.xlu0 %v886, %s903
        %v905 = vpop.permute.xlu0 %904
        %s907 = sor.u32 256, 40
        %908 = vbcast.lane.b32.xlu0 %v886, %s907
        %v909 = vpop.permute.xlu0 %908
        %s911 = sor.u32 256, 48
        %912 = vbcast.lane.b32.xlu0 %v886, %s911
        %v913 = vpop.permute.xlu0 %912
        %s915 = sor.u32 256, 56
        %916 = vbcast.lane.b32.xlu0 %v886, %s915
        %v917 = vpop.permute.xlu0 %916
        %s919 = sor.u32 256, 64
        %920 = vbcast.lane.b32.xlu0 %v886, %s919
        %v921 = vpop.permute.xlu0 %920
        %s923 = sor.u32 256, 72
        %924 = vbcast.lane.b32.xlu0 %v886, %s923
        %v925 = vpop.permute.xlu0 %924
        %s927 = sor.u32 256, 80
        %928 = vbcast.lane.b32.xlu0 %v886, %s927
        %v929 = vpop.permute.xlu0 %928
        %s931 = sor.u32 256, 88
        %932 = vbcast.lane.b32.xlu0 %v886, %s931
        %v933 = vpop.permute.xlu0 %932
        %s935 = sor.u32 256, 96
        %936 = vbcast.lane.b32.xlu0 %v886, %s935
        %v937 = vpop.permute.xlu0 %936
        %s939 = sor.u32 256, 104
        %940 = vbcast.lane.b32.xlu0 %v886, %s939
        %v941 = vpop.permute.xlu0 %940
        %s943 = sor.u32 256, 112
        %944 = vbcast.lane.b32.xlu0 %v886, %s943
        %v945 = vpop.permute.xlu0 %944
        %s947 = sor.u32 256, 120
        %948 = vbcast.lane.b32.xlu0 %v886, %s947
        %v949 = vpop.permute.xlu0 %948
        %v950 = vlaneseq
        %v951 = vshrl.u32 %v950, 7
        %v952 = vsub.s32 4, %v951
        %v953 = vrot.slane %v424, %v952
        %955 = vbcast.lane.b32.xlu0 %v953, 256
        %v956 = vpop.permute.xlu0 %955
        %s958 = sor.u32 256, 8
        %959 = vbcast.lane.b32.xlu0 %v953, %s958
        %v960 = vpop.permute.xlu0 %959
        %s962 = sor.u32 256, 16
        %963 = vbcast.lane.b32.xlu0 %v953, %s962
        %v964 = vpop.permute.xlu0 %963
        %s966 = sor.u32 256, 24
        %967 = vbcast.lane.b32.xlu0 %v953, %s966
        %v968 = vpop.permute.xlu0 %967
        %s970 = sor.u32 256, 32
        %971 = vbcast.lane.b32.xlu0 %v953, %s970
        %v972 = vpop.permute.xlu0 %971
        %s974 = sor.u32 256, 40
        %975 = vbcast.lane.b32.xlu0 %v953, %s974
        %v976 = vpop.permute.xlu0 %975
        %s978 = sor.u32 256, 48
        %979 = vbcast.lane.b32.xlu0 %v953, %s978
        %v980 = vpop.permute.xlu0 %979
        %s982 = sor.u32 256, 56
        %983 = vbcast.lane.b32.xlu0 %v953, %s982
        %v984 = vpop.permute.xlu0 %983
        %s986 = sor.u32 256, 64
        %987 = vbcast.lane.b32.xlu0 %v953, %s986
        %v988 = vpop.permute.xlu0 %987
        %s990 = sor.u32 256, 72
        %991 = vbcast.lane.b32.xlu0 %v953, %s990
        %v992 = vpop.permute.xlu0 %991
        %s994 = sor.u32 256, 80
        %995 = vbcast.lane.b32.xlu0 %v953, %s994
        %v996 = vpop.permute.xlu0 %995
        %s998 = sor.u32 256, 88
        %999 = vbcast.lane.b32.xlu0 %v953, %s998
        %v1000 = vpop.permute.xlu0 %999
        %s1002 = sor.u32 256, 96
        %1003 = vbcast.lane.b32.xlu0 %v953, %s1002
        %v1004 = vpop.permute.xlu0 %1003
        %s1006 = sor.u32 256, 104
        %1007 = vbcast.lane.b32.xlu0 %v953, %s1006
        %v1008 = vpop.permute.xlu0 %1007
        %s1010 = sor.u32 256, 112
        %1011 = vbcast.lane.b32.xlu0 %v953, %s1010
        %v1012 = vpop.permute.xlu0 %1011
        %s1014 = sor.u32 256, 120
        %1015 = vbcast.lane.b32.xlu0 %v953, %s1014
        %v1016 = vpop.permute.xlu0 %1015
        %v1017 = vlaneseq
        %v1018 = vshrl.u32 %v1017, 7
        %v1019 = vsub.s32 5, %v1018
        %v1020 = vrot.slane %v424, %v1019
        %1022 = vbcast.lane.b32.xlu0 %v1020, 256
        %v1023 = vpop.permute.xlu0 %1022
        %s1025 = sor.u32 256, 8
        %1026 = vbcast.lane.b32.xlu0 %v1020, %s1025
        %v1027 = vpop.permute.xlu0 %1026
        %s1029 = sor.u32 256, 16
        %1030 = vbcast.lane.b32.xlu0 %v1020, %s1029
        %v1031 = vpop.permute.xlu0 %1030
        %s1033 = sor.u32 256, 24
        %1034 = vbcast.lane.b32.xlu0 %v1020, %s1033
        %v1035 = vpop.permute.xlu0 %1034
        %s1037 = sor.u32 256, 32
        %1038 = vbcast.lane.b32.xlu0 %v1020, %s1037
        %v1039 = vpop.permute.xlu0 %1038
        %s1041 = sor.u32 256, 40
        %1042 = vbcast.lane.b32.xlu0 %v1020, %s1041
        %v1043 = vpop.permute.xlu0 %1042
        %s1045 = sor.u32 256, 48
        %1046 = vbcast.lane.b32.xlu0 %v1020, %s1045
        %v1047 = vpop.permute.xlu0 %1046
        %s1049 = sor.u32 256, 56
        %1050 = vbcast.lane.b32.xlu0 %v1020, %s1049
        %v1051 = vpop.permute.xlu0 %1050
        %s1053 = sor.u32 256, 64
        %1054 = vbcast.lane.b32.xlu0 %v1020, %s1053
        %v1055 = vpop.permute.xlu0 %1054
        %s1057 = sor.u32 256, 72
        %1058 = vbcast.lane.b32.xlu0 %v1020, %s1057
        %v1059 = vpop.permute.xlu0 %1058
        %s1061 = sor.u32 256, 80
        %1062 = vbcast.lane.b32.xlu0 %v1020, %s1061
        %v1063 = vpop.permute.xlu0 %1062
        %s1065 = sor.u32 256, 88
        %1066 = vbcast.lane.b32.xlu0 %v1020, %s1065
        %v1067 = vpop.permute.xlu0 %1066
        %s1069 = sor.u32 256, 96
        %1070 = vbcast.lane.b32.xlu0 %v1020, %s1069
        %v1071 = vpop.permute.xlu0 %1070
        %s1073 = sor.u32 256, 104
        %1074 = vbcast.lane.b32.xlu0 %v1020, %s1073
        %v1075 = vpop.permute.xlu0 %1074
        %s1077 = sor.u32 256, 112
        %1078 = vbcast.lane.b32.xlu0 %v1020, %s1077
        %v1079 = vpop.permute.xlu0 %1078
        %s1081 = sor.u32 256, 120
        %1082 = vbcast.lane.b32.xlu0 %v1020, %s1081
        %v1083 = vpop.permute.xlu0 %1082
        %v1084 = vlaneseq
        %v1085 = vshrl.u32 %v1084, 7
        %v1086 = vsub.s32 6, %v1085
        %v1087 = vrot.slane %v424, %v1086
        %1089 = vbcast.lane.b32.xlu0 %v1087, 256
        %v1090 = vpop.permute.xlu0 %1089
        %s1092 = sor.u32 256, 8
        %1093 = vbcast.lane.b32.xlu0 %v1087, %s1092
        %v1094 = vpop.permute.xlu0 %1093
        %s1096 = sor.u32 256, 16
        %1097 = vbcast.lane.b32.xlu0 %v1087, %s1096
        %v1098 = vpop.permute.xlu0 %1097
        %s1100 = sor.u32 256, 24
        %1101 = vbcast.lane.b32.xlu0 %v1087, %s1100
        %v1102 = vpop.permute.xlu0 %1101
        %s1104 = sor.u32 256, 32
        %1105 = vbcast.lane.b32.xlu0 %v1087, %s1104
        %v1106 = vpop.permute.xlu0 %1105
        %s1108 = sor.u32 256, 40
        %1109 = vbcast.lane.b32.xlu0 %v1087, %s1108
        %v1110 = vpop.permute.xlu0 %1109
        %s1112 = sor.u32 256, 48
        %1113 = vbcast.lane.b32.xlu0 %v1087, %s1112
        %v1114 = vpop.permute.xlu0 %1113
        %s1116 = sor.u32 256, 56
        %1117 = vbcast.lane.b32.xlu0 %v1087, %s1116
        %v1118 = vpop.permute.xlu0 %1117
        %s1120 = sor.u32 256, 64
        %1121 = vbcast.lane.b32.xlu0 %v1087, %s1120
        %v1122 = vpop.permute.xlu0 %1121
        %s1124 = sor.u32 256, 72
        %1125 = vbcast.lane.b32.xlu0 %v1087, %s1124
        %v1126 = vpop.permute.xlu0 %1125
        %s1128 = sor.u32 256, 80
        %1129 = vbcast.lane.b32.xlu0 %v1087, %s1128
        %v1130 = vpop.permute.xlu0 %1129
        %s1132 = sor.u32 256, 88
        %1133 = vbcast.lane.b32.xlu0 %v1087, %s1132
        %v1134 = vpop.permute.xlu0 %1133
        %s1136 = sor.u32 256, 96
        %1137 = vbcast.lane.b32.xlu0 %v1087, %s1136
        %v1138 = vpop.permute.xlu0 %1137
        %s1140 = sor.u32 256, 104
        %1141 = vbcast.lane.b32.xlu0 %v1087, %s1140
        %v1142 = vpop.permute.xlu0 %1141
        %s1144 = sor.u32 256, 112
        %1145 = vbcast.lane.b32.xlu0 %v1087, %s1144
        %v1146 = vpop.permute.xlu0 %1145
        %s1148 = sor.u32 256, 120
        %1149 = vbcast.lane.b32.xlu0 %v1087, %s1148
        %v1150 = vpop.permute.xlu0 %1149
        %v1151 = vlaneseq
        %v1152 = vshrl.u32 %v1151, 7
        %v1153 = vsub.s32 7, %v1152
        %v1154 = vrot.slane %v424, %v1153
        %1156 = vbcast.lane.b32.xlu0 %v1154, 256
        %v1157 = vpop.permute.xlu0 %1156
        %s1159 = sor.u32 256, 8
        %1160 = vbcast.lane.b32.xlu0 %v1154, %s1159
        %v1161 = vpop.permute.xlu0 %1160
        %s1163 = sor.u32 256, 16
        %1164 = vbcast.lane.b32.xlu0 %v1154, %s1163
        %v1165 = vpop.permute.xlu0 %1164
        %s1167 = sor.u32 256, 24
        %1168 = vbcast.lane.b32.xlu0 %v1154, %s1167
        %v1169 = vpop.permute.xlu0 %1168
        %s1171 = sor.u32 256, 32
        %1172 = vbcast.lane.b32.xlu0 %v1154, %s1171
        %v1173 = vpop.permute.xlu0 %1172
        %s1175 = sor.u32 256, 40
        %1176 = vbcast.lane.b32.xlu0 %v1154, %s1175
        %v1177 = vpop.permute.xlu0 %1176
        %s1179 = sor.u32 256, 48
        %1180 = vbcast.lane.b32.xlu0 %v1154, %s1179
        %v1181 = vpop.permute.xlu0 %1180
        %s1183 = sor.u32 256, 56
        %1184 = vbcast.lane.b32.xlu0 %v1154, %s1183
        %v1185 = vpop.permute.xlu0 %1184
        %s1187 = sor.u32 256, 64
        %1188 = vbcast.lane.b32.xlu0 %v1154, %s1187
        %v1189 = vpop.permute.xlu0 %1188
        %s1191 = sor.u32 256, 72
        %1192 = vbcast.lane.b32.xlu0 %v1154, %s1191
        %v1193 = vpop.permute.xlu0 %1192
        %s1195 = sor.u32 256, 80
        %1196 = vbcast.lane.b32.xlu0 %v1154, %s1195
        %v1197 = vpop.permute.xlu0 %1196
        %s1199 = sor.u32 256, 88
        %1200 = vbcast.lane.b32.xlu0 %v1154, %s1199
        %v1201 = vpop.permute.xlu0 %1200
        %s1203 = sor.u32 256, 96
        %1204 = vbcast.lane.b32.xlu0 %v1154, %s1203
        %v1205 = vpop.permute.xlu0 %1204
        %s1207 = sor.u32 256, 104
        %1208 = vbcast.lane.b32.xlu0 %v1154, %s1207
        %v1209 = vpop.permute.xlu0 %1208
        %s1211 = sor.u32 256, 112
        %1212 = vbcast.lane.b32.xlu0 %v1154, %s1211
        %v1213 = vpop.permute.xlu0 %1212
        %s1215 = sor.u32 256, 120
        %1216 = vbcast.lane.b32.xlu0 %v1154, %s1215
        %v1217 = vpop.permute.xlu0 %1216
        %v1218 = vmul.f32 %v553, %v688
        %v1219 = vmul.f32 %v554, %v692
        %v1220 = vmul.f32 %v555, %v696
        %v1221 = vmul.f32 %v556, %v700
        %v1222 = vmul.f32 %v557, %v704
        %v1223 = vmul.f32 %v558, %v708
        %v1224 = vmul.f32 %v559, %v712
        %v1225 = vmul.f32 %v560, %v716
        %v1226 = vmul.f32 %v561, %v720
        %v1227 = vmul.f32 %v562, %v724
        %v1228 = vmul.f32 %v563, %v728
        %v1229 = vmul.f32 %v564, %v732
        %v1230 = vmul.f32 %v565, %v736
        %v1231 = vmul.f32 %v566, %v740
        %v1232 = vmul.f32 %v567, %v744
        %v1233 = vmul.f32 %v568, %v748
        %v1234 = vmul.f32 %v569, %v755
        %v1235 = vmul.f32 %v570, %v759
        %v1236 = vmul.f32 %v571, %v763
        %v1237 = vmul.f32 %v572, %v767
        %v1238 = vmul.f32 %v573, %v771
        %v1239 = vmul.f32 %v574, %v775
        %v1240 = vmul.f32 %v575, %v779
        %v1241 = vmul.f32 %v576, %v783
        %v1242 = vmul.f32 %v577, %v787
        %v1243 = vmul.f32 %v578, %v791
        %v1244 = vmul.f32 %v579, %v795
        %v1245 = vmul.f32 %v580, %v799
        %v1246 = vmul.f32 %v581, %v803
        %v1247 = vmul.f32 %v582, %v807
        %v1248 = vmul.f32 %v583, %v811
        %v1249 = vmul.f32 %v584, %v815
        %v1250 = vmul.f32 %v585, %v822
        %v1251 = vmul.f32 %v586, %v826
        %v1252 = vmul.f32 %v587, %v830
        %v1253 = vmul.f32 %v588, %v834
        %v1254 = vmul.f32 %v589, %v838
        %v1255 = vmul.f32 %v590, %v842
        %v1256 = vmul.f32 %v591, %v846
        %v1257 = vmul.f32 %v592, %v850
        %v1258 = vmul.f32 %v593, %v854
        %v1259 = vmul.f32 %v594, %v858
        %v1260 = vmul.f32 %v595, %v862
        %v1261 = vmul.f32 %v596, %v866
        %v1262 = vmul.f32 %v597, %v870
        %v1263 = vmul.f32 %v598, %v874
        %v1264 = vmul.f32 %v599, %v878
        %v1265 = vmul.f32 %v600, %v882
        %v1266 = vmul.f32 %v601, %v889
        %v1267 = vmul.f32 %v602, %v893
        %v1268 = vmul.f32 %v603, %v897
        %v1269 = vmul.f32 %v604, %v901
        %v1270 = vmul.f32 %v605, %v905
        %v1271 = vmul.f32 %v606, %v909
        %v1272 = vmul.f32 %v607, %v913
        %v1273 = vmul.f32 %v608, %v917
        %v1274 = vmul.f32 %v609, %v921
        %v1275 = vmul.f32 %v610, %v925
        %v1276 = vmul.f32 %v611, %v929
        %v1277 = vmul.f32 %v612, %v933
        %v1278 = vmul.f32 %v613, %v937
        %v1279 = vmul.f32 %v614, %v941
        %v1280 = vmul.f32 %v615, %v945
        %v1281 = vmul.f32 %v616, %v949
        %v1282 = vmul.f32 %v617, %v956
        %v1283 = vmul.f32 %v618, %v960
        %v1284 = vmul.f32 %v619, %v964
        %v1285 = vmul.f32 %v620, %v968
        %v1286 = vmul.f32 %v621, %v972
        %v1287 = vmul.f32 %v622, %v976
        %v1288 = vmul.f32 %v623, %v980
        %v1289 = vmul.f32 %v624, %v984
        %v1290 = vmul.f32 %v625, %v988
        %v1291 = vmul.f32 %v626, %v992
        %v1292 = vmul.f32 %v627, %v996
        %v1293 = vmul.f32 %v628, %v1000
        %v1294 = vmul.f32 %v629, %v1004
        %v1295 = vmul.f32 %v630, %v1008
        %v1296 = vmul.f32 %v631, %v1012
        %v1297 = vmul.f32 %v632, %v1016
        %v1298 = vmul.f32 %v633, %v1023
        %v1299 = vmul.f32 %v634, %v1027
        %v1300 = vmul.f32 %v635, %v1031
        %v1301 = vmul.f32 %v636, %v1035
        %v1302 = vmul.f32 %v637, %v1039
        %v1303 = vmul.f32 %v638, %v1043
        %v1304 = vmul.f32 %v639, %v1047
        %v1305 = vmul.f32 %v640, %v1051
        %v1306 = vmul.f32 %v641, %v1055
        %v1307 = vmul.f32 %v642, %v1059
        %v1308 = vmul.f32 %v643, %v1063
        %v1309 = vmul.f32 %v644, %v1067
        %v1310 = vmul.f32 %v645, %v1071
        %v1311 = vmul.f32 %v646, %v1075
        %v1312 = vmul.f32 %v647, %v1079
        %v1313 = vmul.f32 %v648, %v1083
        %v1314 = vmul.f32 %v649, %v1090
        %v1315 = vmul.f32 %v650, %v1094
        %v1316 = vmul.f32 %v651, %v1098
        %v1317 = vmul.f32 %v652, %v1102
        %v1318 = vmul.f32 %v653, %v1106
        %v1319 = vmul.f32 %v654, %v1110
        %v1320 = vmul.f32 %v655, %v1114
        %v1321 = vmul.f32 %v656, %v1118
        %v1322 = vmul.f32 %v657, %v1122
        %v1323 = vmul.f32 %v658, %v1126
        %v1324 = vmul.f32 %v659, %v1130
        %v1325 = vmul.f32 %v660, %v1134
        %v1326 = vmul.f32 %v661, %v1138
        %v1327 = vmul.f32 %v662, %v1142
        %v1328 = vmul.f32 %v663, %v1146
        %v1329 = vmul.f32 %v664, %v1150
        %v1330 = vmul.f32 %v665, %v1157
        %v1331 = vmul.f32 %v666, %v1161
        %v1332 = vmul.f32 %v667, %v1165
        %v1333 = vmul.f32 %v668, %v1169
        %v1334 = vmul.f32 %v669, %v1173
        %v1335 = vmul.f32 %v670, %v1177
        %v1336 = vmul.f32 %v671, %v1181
        %v1337 = vmul.f32 %v672, %v1185
        %v1338 = vmul.f32 %v673, %v1189
        %v1339 = vmul.f32 %v674, %v1193
        %v1340 = vmul.f32 %v675, %v1197
        %v1341 = vmul.f32 %v676, %v1201
        %v1342 = vmul.f32 %v677, %v1205
        %v1343 = vmul.f32 %v678, %v1209
        %v1344 = vmul.f32 %v679, %v1213
        %v1345 = vmul.f32 %v680, %v1217
        %v1346 = vadd.f32 %v1218, %v1219
        %v1347 = vadd.f32 %v1346, %v1220
        %v1348 = vadd.f32 %v1347, %v1221
        %v1349 = vadd.f32 %v1348, %v1222
        %v1350 = vadd.f32 %v1349, %v1223
        %v1351 = vadd.f32 %v1350, %v1224
        %v1352 = vadd.f32 %v1351, %v1225
        %v1353 = vadd.f32 %v1352, %v1226
        %v1354 = vadd.f32 %v1353, %v1227
        %v1355 = vadd.f32 %v1354, %v1228
        %v1356 = vadd.f32 %v1355, %v1229
        %v1357 = vadd.f32 %v1356, %v1230
        %v1358 = vadd.f32 %v1357, %v1231
        %v1359 = vadd.f32 %v1358, %v1232
        %v1360 = vadd.f32 %v1359, %v1233
        %v1361 = vrot.slane %v1360, 4
        %v1362 = vadd.f32 %v1360, %v1361
        %v1363 = vrot.slane %v1362, 2
        %v1364 = vadd.f32 %v1362, %v1363
        %v1365 = vrot.slane %v1364, 1
        %v1366 = vadd.f32 %v1364, %v1365
        %v1367 = vadd.f32 %v1234, %v1235
        %v1368 = vadd.f32 %v1367, %v1236
        %v1369 = vadd.f32 %v1368, %v1237
        %v1370 = vadd.f32 %v1369, %v1238
        %v1371 = vadd.f32 %v1370, %v1239
        %v1372 = vadd.f32 %v1371, %v1240
        %v1373 = vadd.f32 %v1372, %v1241
        %v1374 = vadd.f32 %v1373, %v1242
        %v1375 = vadd.f32 %v1374, %v1243
        %v1376 = vadd.f32 %v1375, %v1244
        %v1377 = vadd.f32 %v1376, %v1245
        %v1378 = vadd.f32 %v1377, %v1246
        %v1379 = vadd.f32 %v1378, %v1247
        %v1380 = vadd.f32 %v1379, %v1248
        %v1381 = vadd.f32 %v1380, %v1249
        %v1382 = vrot.slane %v1381, 4
        %v1383 = vadd.f32 %v1381, %v1382
        %v1384 = vrot.slane %v1383, 2
        %v1385 = vadd.f32 %v1383, %v1384
        %v1386 = vrot.slane %v1385, 1
        %v1387 = vadd.f32 %v1385, %v1386
        %v1388 = vadd.f32 %v1250, %v1251
        %v1389 = vadd.f32 %v1388, %v1252
        %v1390 = vadd.f32 %v1389, %v1253
        %v1391 = vadd.f32 %v1390, %v1254
        %v1392 = vadd.f32 %v1391, %v1255
        %v1393 = vadd.f32 %v1392, %v1256
        %v1394 = vadd.f32 %v1393, %v1257
        %v1395 = vadd.f32 %v1394, %v1258
        %v1396 = vadd.f32 %v1395, %v1259
        %v1397 = vadd.f32 %v1396, %v1260
        %v1398 = vadd.f32 %v1397, %v1261
        %v1399 = vadd.f32 %v1398, %v1262
        %v1400 = vadd.f32 %v1399, %v1263
        %v1401 = vadd.f32 %v1400, %v1264
        %v1402 = vadd.f32 %v1401, %v1265
        %v1403 = vrot.slane %v1402, 4
        %v1404 = vadd.f32 %v1402, %v1403
        %v1405 = vrot.slane %v1404, 2
        %v1406 = vadd.f32 %v1404, %v1405
        %v1407 = vrot.slane %v1406, 1
        %v1408 = vadd.f32 %v1406, %v1407
        %v1409 = vadd.f32 %v1266, %v1267
        %v1410 = vadd.f32 %v1409, %v1268
        %v1411 = vadd.f32 %v1410, %v1269
        %v1412 = vadd.f32 %v1411, %v1270
        %v1413 = vadd.f32 %v1412, %v1271
        %v1414 = vadd.f32 %v1413, %v1272
        %v1415 = vadd.f32 %v1414, %v1273
        %v1416 = vadd.f32 %v1415, %v1274
        %v1417 = vadd.f32 %v1416, %v1275
        %v1418 = vadd.f32 %v1417, %v1276
        %v1419 = vadd.f32 %v1418, %v1277
        %v1420 = vadd.f32 %v1419, %v1278
        %v1421 = vadd.f32 %v1420, %v1279
        %v1422 = vadd.f32 %v1421, %v1280
        %v1423 = vadd.f32 %v1422, %v1281
        %v1424 = vrot.slane %v1423, 4
        %v1425 = vadd.f32 %v1423, %v1424
        %v1426 = vrot.slane %v1425, 2
        %v1427 = vadd.f32 %v1425, %v1426
        %v1428 = vrot.slane %v1427, 1
        %v1429 = vadd.f32 %v1427, %v1428
        %v1430 = vadd.f32 %v1282, %v1283
        %v1431 = vadd.f32 %v1430, %v1284
        %v1432 = vadd.f32 %v1431, %v1285
        %v1433 = vadd.f32 %v1432, %v1286
        %v1434 = vadd.f32 %v1433, %v1287
        %v1435 = vadd.f32 %v1434, %v1288
        %v1436 = vadd.f32 %v1435, %v1289
        %v1437 = vadd.f32 %v1436, %v1290
        %v1438 = vadd.f32 %v1437, %v1291
        %v1439 = vadd.f32 %v1438, %v1292
        %v1440 = vadd.f32 %v1439, %v1293
        %v1441 = vadd.f32 %v1440, %v1294
        %v1442 = vadd.f32 %v1441, %v1295
        %v1443 = vadd.f32 %v1442, %v1296
        %v1444 = vadd.f32 %v1443, %v1297
        %v1445 = vrot.slane %v1444, 4
        %v1446 = vadd.f32 %v1444, %v1445
        %v1447 = vrot.slane %v1446, 2
        %v1448 = vadd.f32 %v1446, %v1447
        %v1449 = vrot.slane %v1448, 1
        %v1450 = vadd.f32 %v1448, %v1449
        %v1451 = vadd.f32 %v1298, %v1299
        %v1452 = vadd.f32 %v1451, %v1300
        %v1453 = vadd.f32 %v1452, %v1301
        %v1454 = vadd.f32 %v1453, %v1302
        %v1455 = vadd.f32 %v1454, %v1303
        %v1456 = vadd.f32 %v1455, %v1304
        %v1457 = vadd.f32 %v1456, %v1305
        %v1458 = vadd.f32 %v1457, %v1306
        %v1459 = vadd.f32 %v1458, %v1307
        %v1460 = vadd.f32 %v1459, %v1308
        %v1461 = vadd.f32 %v1460, %v1309
        %v1462 = vadd.f32 %v1461, %v1310
        %v1463 = vadd.f32 %v1462, %v1311
        %v1464 = vadd.f32 %v1463, %v1312
        %v1465 = vadd.f32 %v1464, %v1313
        %v1466 = vrot.slane %v1465, 4
        %v1467 = vadd.f32 %v1465, %v1466
        %v1468 = vrot.slane %v1467, 2
        %v1469 = vadd.f32 %v1467, %v1468
        %v1470 = vrot.slane %v1469, 1
        %v1471 = vadd.f32 %v1469, %v1470
        %v1472 = vadd.f32 %v1314, %v1315
        %v1473 = vadd.f32 %v1472, %v1316
        %v1474 = vadd.f32 %v1473, %v1317
        %v1475 = vadd.f32 %v1474, %v1318
        %v1476 = vadd.f32 %v1475, %v1319
        %v1477 = vadd.f32 %v1476, %v1320
        %v1478 = vadd.f32 %v1477, %v1321
        %v1479 = vadd.f32 %v1478, %v1322
        %v1480 = vadd.f32 %v1479, %v1323
        %v1481 = vadd.f32 %v1480, %v1324
        %v1482 = vadd.f32 %v1481, %v1325
        %v1483 = vadd.f32 %v1482, %v1326
        %v1484 = vadd.f32 %v1483, %v1327
        %v1485 = vadd.f32 %v1484, %v1328
        %v1486 = vadd.f32 %v1485, %v1329
        %v1487 = vrot.slane %v1486, 4
        %v1488 = vadd.f32 %v1486, %v1487
        %v1489 = vrot.slane %v1488, 2
        %v1490 = vadd.f32 %v1488, %v1489
        %v1491 = vrot.slane %v1490, 1
        %v1492 = vadd.f32 %v1490, %v1491
        %v1493 = vadd.f32 %v1330, %v1331
        %v1494 = vadd.f32 %v1493, %v1332
        %v1495 = vadd.f32 %v1494, %v1333
        %v1496 = vadd.f32 %v1495, %v1334
        %v1497 = vadd.f32 %v1496, %v1335
        %v1498 = vadd.f32 %v1497, %v1336
        %v1499 = vadd.f32 %v1498, %v1337
        %v1500 = vadd.f32 %v1499, %v1338
        %v1501 = vadd.f32 %v1500, %v1339
        %v1502 = vadd.f32 %v1501, %v1340
        %v1503 = vadd.f32 %v1502, %v1341
        %v1504 = vadd.f32 %v1503, %v1342
        %v1505 = vadd.f32 %v1504, %v1343
        %v1506 = vadd.f32 %v1505, %v1344
        %v1507 = vadd.f32 %v1506, %v1345
        %v1508 = vrot.slane %v1507, 4
        %v1509 = vadd.f32 %v1507, %v1508
        %v1510 = vrot.slane %v1509, 2
        %v1511 = vadd.f32 %v1509, %v1510
        %v1512 = vrot.slane %v1511, 1
        %v1513 = vadd.f32 %v1511, %v1512
        %vm1522 = vcmask 1041409
        %v1523 = vsel %vm1522, %v1387, %v1366
        %vm1524 = vcmask 1042434
        %v1525 = vsel %vm1524, %v1408, %v1523
        %vm1526 = vcmask 1043459
        %v1527 = vsel %vm1526, %v1429, %v1525
        %vm1528 = vcmask 1044484
        %v1529 = vsel %vm1528, %v1450, %v1527
        %vm1530 = vcmask 1045509
        %v1531 = vsel %vm1530, %v1471, %v1529
        %vm1532 = vcmask 1046534
        %v1533 = vsel %vm1532, %v1492, %v1531
        %vm1534 = vcmask 1047559
        %v1535 = vsel %vm1534, %v1513, %v1533
        %v1537 = vadd.f32 %v681, %v1535
        %1538 = vst [vmem:[#allocation2] sm:$0xff] %v1537
        %v1539 = vld [vmem:[#allocation3] sm:$0xff]
        %1540 = vadd.xlane.f32.xlu0 %v424
        %v1541 = vpop.xlane.xlu0 %1540
        %v1542 = vadd.f32 %v1539, %v1541
        %vm1543 = vcmask 7168
        %1544 = vst.msk [vmem:[#allocation3] sm:$0xff] %vm1543, %v1542
        %p1545 = scmp.eq.s32.totalorder %s35, 1
        // Predicated region
        $region61: #{tpu_custom_call.1} parent=39 // pred_check
          %p1546 = pneg %p1545
        $region62: #{tpu_custom_call.1} parent=39 // pred_check_branch
          %1548 = sbr.rel (%p1546) target = $region64
        $region63: #{tpu_custom_call.1} parent=39 // pred_region
          %v1549 = vld [vmem:[#allocation2] sm:$0xff]
          %v1550 = vld [vmem:[#allocation3] sm:$0xff]
          %v1551 = vmax.f32 %v1550, 1.0
          %1553 = vset.pattern.permute.xlu0 0
          %1554 = vperm.xlu0 %1553, %v1551
          %v1555 = vpop.permute.xlu0 %1554
          %v1557 = vrcp.pop %v1555
          %v1558 = vmul.f32 %v1549, %v1557
          %v1559 = vld [vmem:[#allocation9] sm:$0xff]
          %v1560 = vld [vmem:[#allocation9 + $0x8] sm:$0xff]
          %v1561 = vld [vmem:[#allocation9 + $0x10] sm:$0xff]
          %v1562 = vld [vmem:[#allocation9 + $0x18] sm:$0xff]
          %v1563 = vld [vmem:[#allocation9 + $0x20] sm:$0xff]
          %v1564 = vld [vmem:[#allocation9 + $0x28] sm:$0xff]
          %v1565 = vld [vmem:[#allocation9 + $0x30] sm:$0xff]
          %v1566 = vld [vmem:[#allocation9 + $0x38] sm:$0xff]
          %v1567 = vld [vmem:[#allocation9 + $0x40] sm:$0xff]
          %v1568 = vld [vmem:[#allocation9 + $0x48] sm:$0xff]
          %v1569 = vld [vmem:[#allocation9 + $0x50] sm:$0xff]
          %v1570 = vld [vmem:[#allocation9 + $0x58] sm:$0xff]
          %v1571 = vld [vmem:[#allocation9 + $0x60] sm:$0xff]
          %v1572 = vld [vmem:[#allocation9 + $0x68] sm:$0xff]
          %v1573 = vld [vmem:[#allocation9 + $0x70] sm:$0xff]
          %v1574 = vld [vmem:[#allocation9 + $0x78] sm:$0xff]
          %v1575 = vld [vmem:[%s3] sm:$0x1]
          %v1577 = vlaneseq
          %v1578 = vshrl.u32 %v1577, 7
          %v1579 = vsub.s32 0, %v1578
          %v1580 = vrot.slane %v1575, %v1579
          %1582 = vmatprep.subr.mxu0 0.0
          %1583 = vmatpush1.msra.mxu0 %v1559
          %1584 = vmatprep.subr.mxu0 0.0
          %1585 = vmatpush1.msra.mxu0 %v1560
          %1586 = vmatprep.subr.mxu0 0.0
          %1587 = vmatpush1.msra.mxu0 %v1561
          %1588 = vmatprep.subr.mxu0 0.0
          %1589 = vmatpush1.msra.mxu0 %v1562
          %1590 = vmatprep.subr.mxu0 0.0
          %1591 = vmatpush1.msra.mxu0 %v1563
          %1592 = vmatprep.subr.mxu0 0.0
          %1593 = vmatpush1.msra.mxu0 %v1564
          %1594 = vmatprep.subr.mxu0 0.0
          %1595 = vmatpush1.msra.mxu0 %v1565
          %1596 = vmatprep.subr.mxu0 0.0
          %1597 = vmatpush1.msra.mxu0 %v1566
          %1598 = vmatprep.subr.mxu0 0.0
          %1599 = vmatpush1.msra.mxu0 %v1567
          %1600 = vmatprep.subr.mxu0 0.0
          %1601 = vmatpush1.msra.mxu0 %v1568
          %1602 = vmatprep.subr.mxu0 0.0
          %1603 = vmatpush1.msra.mxu0 %v1569
          %1604 = vmatprep.subr.mxu0 0.0
          %1605 = vmatpush1.msra.mxu0 %v1570
          %1606 = vmatprep.subr.mxu0 0.0
          %1607 = vmatpush1.msra.mxu0 %v1571
          %1608 = vmatprep.subr.mxu0 0.0
          %1609 = vmatpush1.msra.mxu0 %v1572
          %1610 = vmatprep.subr.mxu0 0.0
          %1611 = vmatpush1.msra.mxu0 %v1573
          %1612 = vmatprep.subr.mxu0 0.0
          %1613 = vmatpush1.msra.mxu0 %v1574
          %1614 = vmatprep.subr.mxu0 0.0
          %1615 = vmatpush1.msra.mxu0 0.0
          %1616 = vmatprep.subr.mxu0 0.0
          %1617 = vmatpush1.msra.mxu0 0.0
          %1618 = vmatprep.subr.mxu0 0.0
          %1619 = vmatpush1.msra.mxu0 0.0
          %1620 = vmatprep.subr.mxu0 0.0
          %1621 = vmatpush1.msra.mxu0 0.0
          %1622 = vmatprep.subr.mxu0 0.0
          %1623 = vmatpush1.msra.mxu0 0.0
          %1624 = vmatprep.subr.mxu0 0.0
          %1625 = vmatpush1.msra.mxu0 0.0
          %1626 = vmatprep.subr.mxu0 0.0
          %1627 = vmatpush1.msra.mxu0 0.0
          %1628 = vmatprep.subr.mxu0 0.0
          %1629 = vmatpush1.msra.mxu0 0.0
          %1630 = vmatprep.subr.mxu0 0.0
          %1631 = vmatpush1.msra.mxu0 0.0
          %1632 = vmatprep.subr.mxu0 0.0
          %1633 = vmatpush1.msra.mxu0 0.0
          %1634 = vmatprep.subr.mxu0 0.0
          %1635 = vmatpush1.msra.mxu0 0.0
          %1636 = vmatprep.subr.mxu0 0.0
          %1637 = vmatpush1.msra.mxu0 0.0
          %1638 = vmatprep.subr.mxu0 0.0
          %1639 = vmatpush1.msra.mxu0 0.0
          %1640 = vmatprep.subr.mxu0 0.0
          %1641 = vmatpush1.msra.mxu0 0.0
          %1642 = vmatprep.subr.mxu0 0.0
          %1643 = vmatpush1.msra.mxu0 0.0
          %1644 = vmatprep.subr.mxu0 0.0
          %1645 = vmatpush1.msra.mxu0 0.0
          %1646 = vmatprep.mubr.f32.mxu0 0.0
          %1647 = vmatmul.mubr.f32.gmra.mrb[0].mxu0 %v1558
          %v1648 = vpop.f32.mrb[0].mxu0
          %v1649 = vadd.f32 %v1580, %v1648
          %v1650 = vpop.f32.mrb[0].mxu0
          %1651 = vdwg.mxu0
          %v1652 = vlaneseq
          %v1653 = vand.u32 %v1652, 127
          %vm1654 = vcmp.lt.s32.totalorder %v1653, 4
          %v1655 = vsel %vm1654, 1, 0
          %vm1656 = vcmp.eq.s32.totalorder %v1655, 1
          %v1657 = vsel %vm1656, %v1649, -inf
          %1658 = vmax.xlane.f32.xlu0 %v1657
          %v1659 = vpop.xlane.xlu0 %1658
          %v1660 = vsub.f32 %v1657, %v1659
          %v1661 = vmul.f32 %v1660, 1.442695
          %v1662 = vpow.pop %v1661
          %1663 = vadd.xlane.f32.xlu0 %v1662
          %v1664 = vpop.xlane.xlu0 %1663
          %v1665 = vrcp.pop %v1664
          %v1666 = vmul.f32 %v1662, %v1665
          %1667 = vst [vmem:[%s404] sm:$0xff] %v1666
          %v1668 = vsel %vm1656, %v1666, -inf
          %1669 = vmax.xlane.f32.xlu0 %v1668
          %v1670 = vpop.xlane.xlu0 %1669
          %v1671 = vsub.f32 %v1668, %v1670
          %v1672 = vmul.f32 %v1671, 1.442695
          %v1673 = vpow.pop %v1672
          %1674 = vadd.xlane.f32.xlu0 %v1673
          %v1675 = vpop.xlane.xlu0 %1674
          %v1676 = vlog2.pop %v1675
          %v1677 = vmul.f32 %v1676, 0.6931472
          %v1678 = vadd.f32 %v1670, %v1677
          %v1679 = vsub.f32 %v1666, %v1678
          %v1680 = vld [vmem:[%s368] sm:$0xff]
          %v1681 = vmul.f32 %v1680, %v1679
          %1682 = vadd.xlane.f32.xlu0 %v1681
          %v1683 = vpop.xlane.xlu0 %1682
          %v1684 = vsub.f32 0.0, %v1683
          %1685 = vst.msk [vmem:[%s416] sm:$0xff] %vm1543, %v1684
        $region64: #{tpu_custom_call.1} parent=39 // pred_fallthru
          _
        %s1686 = sand.u32 %s174, 1
        %s1687 = scalar_lea.sflag [#allocation6], %s1686
        %s1688 = sand.u32 %s174, 1
        %s1689 = smul.addr %s1688, 8
        %s1690 = scalar_lea.vmem [#allocation12], %s1689
        %p1691 = scmp.lt.s32.totalorder %s34, 1
        %s1692 = scalar_select %p1691, %s34, 1
        %s1693 = smul.addr %s1692, 8
        %s1694 = scalar_lea.vmem %s6, %s1693
        // Predicated region
        $region65: #{tpu_custom_call.1} parent=39 // pred_check
          %p1695 = pneg %p184
        $region66: #{tpu_custom_call.1} parent=39 // pred_check_branch
          %1697 = sbr.rel (%p1695) target = $region68
        $region67: #{tpu_custom_call.1} parent=39 // pred_region
          %s1699 = ssub.s32 128, 128
          %1700 = vsyncadd %s1687, %s1699
          %s1701 = smul.addr %s34, 128
          %s1702 = scalar_lea.hbm %s5, %s1701
          %s1704 = sshll.u32 %s1690, 4
          %s1705 = int_to_ptr.vmem [resolvable:$true] %s1704
          %1707 = dma.vmem_to_hbm [thread:$0]  %s1705, 128, %s1702, %s1687
        $region68: #{tpu_custom_call.1} parent=39 // pred_fallthru
          _
        // Predicated region
        $region69: #{tpu_custom_call.1} parent=39 // pred_check
          %p1708 = pneg %p210
        $region70: #{tpu_custom_call.1} parent=39 // pred_check_branch
          %1710 = sbr.rel (%p1708) target = $region72
        $region71: #{tpu_custom_call.1} parent=39 // pred_region
          _
        $region72: #{tpu_custom_call.1} parent=39 // pred_fallthru
          _
      $region40: #{tpu_custom_call.1} parent=5 // pred_fallthru
        _
      %p1711 = scmp.le.s32.totalorder 2, %s25
      // Predicated region
      $region73: #{tpu_custom_call.1} parent=5 // pred_check
        %p1712 = pneg %p1711
      $region74: #{tpu_custom_call.1} parent=5 // pred_check_branch
        %1714 = sbr.rel (%p1712) target = $region76
      $region75: #{tpu_custom_call.1} parent=5 // pred_region
        %s1715 = ssub.s32 %s25, 2
        // Predicated region
        $region77: #{tpu_custom_call.1} parent=75 // pred_check
          %p1716 = pneg %p190
        $region78: #{tpu_custom_call.1} parent=75 // pred_check_branch
          %1718 = sbr.rel (%p1716) target = $region80
        $region79: #{tpu_custom_call.1} parent=75 // pred_region
          %s1719 = sand.u32 %s175, 1
          %s1720 = scalar_lea.sflag [#allocation6], %s1719
          %s1721 = sand.u32 %s175, 1
          %s1722 = smul.addr %s1721, 8
          %s1723 = scalar_lea.vmem [#allocation12], %s1722
          %1724 = dma.done %s1720, 128
        $region80: #{tpu_custom_call.1} parent=75 // pred_fallthru
          _
        // Predicated region
        $region81: #{tpu_custom_call.1} parent=75 // pred_check
          %p1725 = pneg %p216
        $region82: #{tpu_custom_call.1} parent=75 // pred_check_branch
          %1727 = sbr.rel (%p1725) target = $region84
        $region83: #{tpu_custom_call.1} parent=75 // pred_region
          %p1728 = scmp.lt.s32.totalorder %s36, 1
          %s1729 = scalar_select %p1728, %s36, 1
          %s1730 = smul.addr %s1729, 8
          %s1731 = scalar_lea.vmem %s6, %s1730
        $region84: #{tpu_custom_call.1} parent=75 // pred_fallthru
          _
      $region76: #{tpu_custom_call.1} parent=5 // pred_fallthru
        _
    $region6: #{tpu_custom_call.1} parent=1 // loop_footer
      %s29 = sadd.s32 1, %s25
    $region7: #{tpu_custom_call.1} parent=1 // loop_footer_branch
      %24 = sbr.rel target = $region3
    $region8: #{tpu_custom_call.1} parent=1 // loop_exit
      _
    %1732 = vsyncpa [#allocation5], 1
    %s1733 = scalar_lea.sflag [#allocation5], 1
    %1734 = vsyncpa %s1733, 1
    %1735 = vsyncpa [#allocation8], 1
    %s1736 = scalar_lea.sflag [#allocation8], 1
    %1737 = vsyncpa %s1736, 1
    %1738 = vsyncpa [#allocation11], 1
    %s1739 = scalar_lea.sflag [#allocation11], 1
    %1740 = vsyncpa %s1739, 1
    %1741 = vsyncpa [#allocation6], 1
    %s1742 = scalar_lea.sflag [#allocation6], 1
    %1743 = vsyncpa %s1742, 1

</llo_original>
